<compile_context>
chip_gen: v5e
topology: v5e:2x2
jax: 0.10.0
libtpu: 0.0.40
codegen_flags: <defaults>
</compile_context>

<pallas_src>
import jax
import jax.numpy as jnp
from jax.experimental import pallas as pl
from jax.experimental.pallas import tpu as pltpu

_BN_EPS = 1e-5
_VMEM_LIMIT_BYTES = 64 * 1024 * 1024


# --------------------------------------------------------------------------
# Shared conv core: 3x3 "SAME" conv from an already zero-padded VMEM scratch
# pad_ref of shape (H+2, W+2, Cin).  Accumulate in f32; epilogue (folded BN +
# conv bias) in f32; ReLU; store in o_ref.dtype.
# --------------------------------------------------------------------------
def _conv3x3_from_pad(pad_ref, w_ref, scale_ref, shift_ref, o_ref, H, W, Cin, Cout):
    nm = H * W
    acc = jnp.zeros((nm, Cout), jnp.float32)
    if Cin < 128:
        # Collapsed taps: one K=3*Cin matmul per dy (keeps the MXU K-dim fed
        # when Cin is small; the im2col copy is only 3x a small row block).
        for dy in range(3):
            stripe = pad_ref[pl.ds(dy, H), :, :]                  # (H, W+2, Cin)
            patch = jnp.concatenate(
                [stripe[:, 0:W, :], stripe[:, 1:W + 1, :], stripe[:, 2:W + 2, :]],
                axis=-1,
            ).reshape(nm, 3 * Cin)                                # (H*W, 3*Cin)
            acc = acc + jnp.dot(patch, w_ref[dy],
                                preferred_element_type=jnp.float32)
    else:
        # Large Cin: skip the im2col copy -- 9 shifted K=Cin matmuls straight
        # from the padded scratch (no 3x activation-size VMEM copy).
        for dy in range(3):
            for dx in range(3):
                tap = pad_ref[pl.ds(dy, H), pl.ds(dx, W), :].reshape(nm, Cin)
                acc = acc + jnp.dot(tap, w_ref[dy, dx * Cin:(dx + 1) * Cin, :],
                                    preferred_element_type=jnp.float32)
    acc = acc * scale_ref[...] + shift_ref[...]                   # folded BN + bias (f32)
    o_ref[0] = jnp.maximum(acc, 0.0).reshape(H, W, Cout).astype(o_ref.dtype)


# --------------------------------------------------------------------------
# Fused layer-0 kernel: CCA gate-apply + ReLU on skip, in-VMEM nearest 2x
# upsample of x, direct channel-half writes into the padded scratch, 3x3 conv
# + folded BN + ReLU.  One grid step per (batch, row-block).
# --------------------------------------------------------------------------
def _fused_first_kernel(skip_ref, skip_top_ref, skip_bot_ref,
                        x_ref, x_top_ref, x_bot_ref,
                        gate_ref, w_ref, scale_ref, shift_ref,
                        o_ref, pad_ref):
    TH = skip_ref.shape[1]          # output / skip rows per block
    W2 = skip_ref.shape[2]          # full (upsampled) width
    C = skip_ref.shape[3]
    Cout = o_ref.shape[-1]
    cdt = pad_ref.dtype

    r = pl.program_id(1)
    nr = pl.num_programs(1)
    tmask = (r > 0).astype(jnp.float32)          # top halo valid?
    bmask = (r < nr - 1).astype(jnp.float32)     # bottom halo valid?

    gate = gate_ref[...].astype(jnp.float32)     # (1, 1, C)

    # Halo columns (left / right image border): the only explicit zero stores.
    pad_ref[:, 0:1, :] = jnp.zeros((TH + 2, 1, 2 * C), cdt)
    pad_ref[:, W2 + 1:W2 + 2, :] = jnp.zeros((TH + 2, 1, 2 * C), cdt)

    # Interior rows 1..TH — channel half 0: relu(skip * gate)  (CCA apply).
    gated = jnp.maximum(skip_ref[0].astype(jnp.float32) * gate, 0.0)
    pad_ref[pl.ds(1, TH), pl.ds(1, W2), 0:C] = gated.astype(cdt)

    # Interior rows 1..TH — channel half 1: nearest 2x upsample of x, in VMEM.
    xb = x_ref[0]                                              # (TH//2, W, C)
    up = jnp.repeat(jnp.repeat(xb, 2, axis=1), 2, axis=0)      # (TH, 2W, C)
    pad_ref[pl.ds(1, TH), pl.ds(1, W2), C:2 * C] = up.astype(cdt)

    # Top halo row (row 0): neighbor data inside the image, zeros at border.
    g_top = jnp.maximum(skip_top_ref[0].astype(jnp.float32) * gate, 0.0) * tmask
    pad_ref[0:1, pl.ds(1, W2), 0:C] = g_top.astype(cdt)
    u_top = jnp.repeat(x_top_ref[0].astype(jnp.float32), 2, axis=1) * tmask
    pad_ref[0:1, pl.ds(1, W2), C:2 * C] = u_top.astype(cdt)

    # Bottom halo row (row TH+1).
    g_bot = jnp.maximum(skip_bot_ref[0].astype(jnp.float32) * gate, 0.0) * bmask
    pad_ref[TH + 1:TH + 2, pl.ds(1, W2), 0:C] = g_bot.astype(cdt)
    u_bot = jnp.repeat(x_bot_ref[0].astype(jnp.float32), 2, axis=1) * bmask
    pad_ref[TH + 1:TH + 2, pl.ds(1, W2), C:2 * C] = u_bot.astype(cdt)

    _conv3x3_from_pad(pad_ref, w_ref, scale_ref, shift_ref, o_ref, TH, W2, 2 * C, Cout)


def fused_cca_concat_conv(skip, x, gate, w, scale, shift, *, row_tile, compute_dtype):
    """skip: (B,2H,2W,C) NHWC; x: (B,H,W,C) NHWC; gate: (B,C) f32."""
    B, H2, W2, C = skip.shape
    _, Hx, Wx, _ = x.shape
    Cout = w.shape[-1]
    TH = row_tile
    THx = TH // 2
    nrb = H2 // TH
    w_r = w.reshape(3, 3 * 2 * C, Cout).astype(compute_dtype)

    return pl.pallas_call(
        _fused_first_kernel,
        out_shape=jax.ShapeDtypeStruct((B, H2, W2, Cout), compute_dtype),
        grid_spec=pltpu.PrefetchScalarGridSpec(
            num_scalar_prefetch=0,
            grid=(B, nrb),
            in_specs=[
                # skip: main rows + 1-row halos (re-read; clamped at the border,
                # the kernel masks the clamped rows to zero).
                pl.BlockSpec((1, TH, W2, C), lambda b, r: (b, r, 0, 0)),
                pl.BlockSpec((1, 1, W2, C),
                             lambda b, r: (b, jnp.maximum(r * TH - 1, 0), 0, 0)),
                pl.BlockSpec((1, 1, W2, C),
                             lambda b, r: (b, jnp.minimum(r * TH + TH, H2 - 1), 0, 0)),
                # x (upsample source): half-size row blocks + halos.
                pl.BlockSpec((1, THx, Wx, C), lambda b, r: (b, r, 0, 0)),
                pl.BlockSpec((1, 1, Wx, C),
                             lambda b, r: (b, jnp.maximum(r * THx - 1, 0), 0, 0)),
                pl.BlockSpec((1, 1, Wx, C),
                             lambda b, r: (b, jnp.minimum(r * THx + THx, Hx - 1), 0, 0)),
                pl.BlockSpec((1, 1, C), lambda b, r: (b, 0, 0)),            # gate
                pl.BlockSpec((3, 3 * 2 * C, Cout), lambda b, r: (0, 0, 0)),  # weights
                pl.BlockSpec((1, Cout), lambda b, r: (0, 0)),               # BN scale
                pl.BlockSpec((1, Cout), lambda b, r: (0, 0)),               # BN shift
            ],
            out_specs=pl.BlockSpec((1, TH, W2, Cout), lambda b, r: (b, r, 0, 0)),
            scratch_shapes=[pltpu.VMEM((TH + 2, W2 + 2, 2 * C), compute_dtype)],
        ),
        compiler_params=pltpu.CompilerParams(
            dimension_semantics=("parallel", "parallel"),
            vmem_limit_bytes=_VMEM_LIMIT_BYTES,
        ),
    )(skip, skip, skip, x, x, x, gate[:, None, :], w_r,
      scale[None, :].astype(jnp.float32), shift[None, :].astype(jnp.float32))


# --------------------------------------------------------------------------
# Conv3x3 + BN + ReLU kernel (layers 1..nb_conv-1), row-blocked with halos.
# --------------------------------------------------------------------------
def _conv_bn_relu_kernel(x_ref, top_ref, bot_ref, w_ref, scale_ref, shift_ref,
                         o_ref, pad_ref):
    TH = x_ref.shape[1]
    W = x_ref.shape[2]
    Cin = x_ref.shape[3]
    Cout = o_ref.shape[-1]
    cdt = pad_ref.dtype

    r = pl.program_id(1)
    nr = pl.num_programs(1)
    tmask = (r > 0).astype(jnp.float32)
    bmask = (r < nr - 1).astype(jnp.float32)

    # Halo columns only (no full-scratch re-zero).
    pad_ref[:, 0:1, :] = jnp.zeros((TH + 2, 1, Cin), cdt)
    pad_ref[:, W + 1:W + 2, :] = jnp.zeros((TH + 2, 1, Cin), cdt)

    pad_ref[pl.ds(1, TH), pl.ds(1, W), :] = x_ref[0].astype(cdt)
    pad_ref[0:1, pl.ds(1, W), :] = (top_ref[0].astype(jnp.float32) * tmask).astype(cdt)
    pad_ref[TH + 1:TH + 2, pl.ds(1, W), :] = (bot_ref[0].astype(jnp.float32) * bmask).astype(cdt)

    _conv3x3_from_pad(pad_ref, w_ref, scale_ref, shift_ref, o_ref, TH, W, Cin, Cout)


def conv_bn_relu(x, w, scale, shift, *, row_tile, compute_dtype):
    B, H, W, Cin = x.shape
    Cout = w.shape[-1]
    TH = row_tile
    nrb = H // TH
    w_r = w.reshape(3, 3 * Cin, Cout).astype(compute_dtype)

    return pl.pallas_call(
        _conv_bn_relu_kernel,
        out_shape=jax.ShapeDtypeStruct((B, H, W, Cout), compute_dtype),
        grid_spec=pltpu.PrefetchScalarGridSpec(
            num_scalar_prefetch=0,
            grid=(B, nrb),
            in_specs=[
                pl.BlockSpec((1, TH, W, Cin), lambda b, r: (b, r, 0, 0)),
                pl.BlockSpec((1, 1, W, Cin),
                             lambda b, r: (b, jnp.maximum(r * TH - 1, 0), 0, 0)),
                pl.BlockSpec((1, 1, W, Cin),
                             lambda b, r: (b, jnp.minimum(r * TH + TH, H - 1), 0, 0)),
                pl.BlockSpec((3, 3 * Cin, Cout), lambda b, r: (0, 0, 0)),
                pl.BlockSpec((1, Cout), lambda b, r: (0, 0)),
                pl.BlockSpec((1, Cout), lambda b, r: (0, 0)),
            ],
            out_specs=pl.BlockSpec((1, TH, W, Cout), lambda b, r: (b, r, 0, 0)),
            scratch_shapes=[pltpu.VMEM((TH + 2, W + 2, Cin), compute_dtype)],
        ),
        compiler_params=pltpu.CompilerParams(
            dimension_semantics=("parallel", "parallel"),
            vmem_limit_bytes=_VMEM_LIMIT_BYTES,
        ),
    )(x, x, x, w_r, scale[None, :].astype(jnp.float32), shift[None, :].astype(jnp.float32))


# --------------------------------------------------------------------------
# Helpers
# --------------------------------------------------------------------------
def _fold_bn(layer):
    sc = layer["gamma"] / jnp.sqrt(layer["var"] + _BN_EPS)
    sh = layer["beta"] - layer["mean"] * sc + layer["b"] * sc   # conv bias folded in
    return sc, sh


def _auto_row_tile(n_rows, n_cols, cin, cout, compute_dtype, budget_bytes=24 << 20):
    """Largest even row tile dividing n_rows whose est. VMEM footprint fits budget."""
    bpe = jnp.dtype(compute_dtype).itemsize
    best = 2
    for th in range(2, n_rows + 1, 2):
        if n_rows % th:
            continue
        pad = (th + 2) * (n_cols + 2) * cin * bpe
        patch = th * n_cols * 3 * cin * bpe if cin < 128 else 0
        io = 2 * th * n_cols * (cin + cout) * bpe            # ~double-buffered blocks
        acc = th * n_cols * cout * 4
        if pad + patch + io + acc <= budget_bytes:
            best = th
    return best


# --------------------------------------------------------------------------
# Full forward: UpBlock_attention(x, skip_x)
# --------------------------------------------------------------------------
def upblock_attention(x, skip_x, params, *, compute_dtype=jnp.bfloat16, row_tile=None):
    """x: (B, in_ch//2, H, W) NCHW; skip_x: (B, in_ch//2, 2H, 2W) NCHW. Returns f32 NCHW."""
    x_nhwc = jnp.transpose(x, (0, 2, 3, 1))          # (B, H, W, C)
    skip_nhwc = jnp.transpose(skip_x, (0, 2, 3, 1))  # (B, 2H, 2W, C)
    B, Hx, Wx, C = x_nhwc.shape
    H2, W2 = skip_nhwc.shape[1], skip_nhwc.shape[2]
    assert (H2, W2) == (2 * Hx, 2 * Wx)

    # CCA channel gate: tiny (B,C) work, batched matmuls in XLA (f32).
    # NOTE: relies on mean(nearest-2x-up(x)) == mean(x); exact for the module's
    # nn.Upsample(scale_factor=2) nearest mode with even H,W.
    avg_x = jnp.mean(skip_nhwc, axis=(1, 2))          # (B, C)
    avg_g = jnp.mean(x_nhwc, axis=(1, 2))             # (B, C) == mean(up)
    att = 0.5 * ((avg_x @ params["cca_wx"] + params["cca_bx"])
                 + (avg_g @ params["cca_wg"] + params["cca_bg"]))
    gate = jax.nn.sigmoid(att)                        # (B, C) f32

    layers = params["convs"]
    cout0 = layers[0]["w"].shape[-1]
    if row_tile is None:
        row_tile = _auto_row_tile(H2, W2, max(2 * C, cout0), cout0, compute_dtype)
    assert row_tile % 2 == 0 and H2 % row_tile == 0, (row_tile, H2)

    # Inputs / inter-layer activations in compute dtype (bf16 halves HBM+VMEM).
    skip_c = skip_nhwc.astype(compute_dtype)
    x_c = x_nhwc.astype(compute_dtype)

    # Layer 0: fused gate-apply + in-VMEM upsample/concat + Conv3x3 + BN + ReLU.
    sc0, sh0 = _fold_bn(layers[0])
    h = fused_cca_concat_conv(skip_c, x_c, gate, layers[0]["w"], sc0, sh0,
                              row_tile=row_tile, compute_dtype=compute_dtype)

    # Remaining ConvBatchNorm layers.
    # TODO(synk): BatchNorm is evaluated in inference mode (running stats);
    #             train-mode batch statistics are not reproduced.
    for layer in layers[1:]:
        sc, sh = _fold_bn(layer)
        h = conv_bn_relu(h, layer["w"], sc, sh,
                         row_tile=row_tile, compute_dtype=compute_dtype)

    return jnp.transpose(h.astype(jnp.float32), (0, 3, 1, 2))   # back to NCHW, f32


# --------------------------------------------------------------------------
# Pure-JAX reference (faithful to the torch module; f32 throughout).
# --------------------------------------------------------------------------
def reference_forward(x, skip_x, params):
    up = jnp.repeat(jnp.repeat(x, 2, axis=2), 2, axis=3)
    avg_x = jnp.mean(skip_x, axis=(2, 3))
    avg_g = jnp.mean(up, axis=(2, 3))
    att = 0.5 * ((avg_x @ params["cca_wx"] + params["cca_bx"])
                 + (avg_g @ params["cca_wg"] + params["cca_bg"]))
    scale = jax.nn.sigmoid(att)[:, :, None, None]
    skip_att = jnp.maximum(skip_x * scale, 0.0)
    h = jnp.concatenate([skip_att, up], axis=1)
    for layer in params["convs"]:
        h = jax.lax.conv_general_dilated(
            h, layer["w"], (1, 1), "SAME",
            dimension_numbers=("NCHW", "HWIO", "NCHW"))
        h = h + layer["b"][None, :, None, None]
        sc = layer["gamma"] / jnp.sqrt(layer["var"] + _BN_EPS)
        sh = layer["beta"] - layer["mean"] * sc
        h = jnp.maximum(h * sc[None, :, None, None] + sh[None, :, None, None], 0.0)
    return h


# --------------------------------------------------------------------------
# Deterministic parameter init (shapes implied by the module's __init__)
# --------------------------------------------------------------------------
def init_params(key, in_channels, out_channels, nb_conv):
    c_half = in_channels // 2
    keys = iter(jax.random.split(key, 4 + 6 * nb_conv))

    def nrm(shape, s=0.1):
        return s * jax.random.normal(next(keys), shape, jnp.float32)

    params = {
        "cca_wx": nrm((c_half, c_half)),   # nn.Linear as (in, out); applied v @ W + b
        "cca_bx": nrm((c_half,)),
        "cca_wg": nrm((c_half, c_half)),
        "cca_bg": nrm((c_half,)),
        "convs": [],
    }
    cin = in_channels
    for _ in range(nb_conv):
        params["convs"].append({
            "w": nrm((3, 3, cin, out_channels)),          # HWIO
            "b": nrm((out_channels,)),
            "gamma": 1.0 + nrm((out_channels,)),
            "beta": nrm((out_channels,)),
            "mean": nrm((out_channels,)),
            "var": 1.0 + jnp.abs(nrm((out_channels,))),
        })
        cin = out_channels
    return params


if __name__ == "__main__":
    B = 2
    in_channels = 8       # decoder input channels (x has in_channels // 2)
    out_channels = 4
    nb_conv = 2
    H = W = 8             # x spatial; skip_x is 2H x 2W
    c_half = in_channels // 2

    root = jax.random.PRNGKey(0)
    k_param, k_x, k_skip = jax.random.split(root, 3)
    params = init_params(k_param, in_channels, out_channels, nb_conv)

    x = jax.random.normal(k_x, (B, c_half, H, W), jnp.float32)
    skip_x = jax.random.normal(k_skip, (B, c_half, 2 * H, 2 * W), jnp.float32)

    ref = reference_forward(x, skip_x, params)

    # f32 path, 4 row-blocks per image -> exercises the halo logic, tight check.
    out_f32 = jax.block_until_ready(
        upblock_attention(x, skip_x, params, compute_dtype=jnp.float32, row_tile=4))
    assert out_f32.shape == (B, out_channels, 2 * H, 2 * W), out_f32.shape
    err_f32 = float(jnp.max(jnp.abs(out_f32 - ref)))
    assert err_f32 < 1e-3, f"f32 mismatch vs reference: {err_f32}"

    # bf16 MXU path (default), 2 row-blocks; f32 accumulation bounds the error.
    out_bf16 = jax.block_until_ready(
        upblock_attention(x, skip_x, params, compute_dtype=jnp.bfloat16, row_tile=8))
    assert out_bf16.shape == (B, out_channels, 2 * H, 2 * W), out_bf16.shape
    tol = 5e-2 * float(jnp.maximum(1.0, jnp.max(jnp.abs(ref))))
    err_bf16 = float(jnp.max(jnp.abs(out_bf16 - ref)))
    assert err_bf16 < tol, f"bf16 mismatch vs reference: {err_bf16} (tol {tol})"

    print("KERNEL_OK")
</pallas_src>

<mosaic_0001>
module attributes {stable_mosaic.version = 11 : i64} {
  func.func @_fused_first_kernel(%arg0: i32, %arg1: i32, %arg2: memref<1x4x16x4xf32, #tpu.memory_space<vmem>>, %arg3: memref<1x1x16x4xf32, #tpu.memory_space<vmem>>, %arg4: memref<1x1x16x4xf32, #tpu.memory_space<vmem>>, %arg5: memref<1x2x8x4xf32, #tpu.memory_space<vmem>>, %arg6: memref<1x1x8x4xf32, #tpu.memory_space<vmem>>, %arg7: memref<1x1x8x4xf32, #tpu.memory_space<vmem>>, %arg8: memref<1x1x4xf32, #tpu.memory_space<vmem>>, %arg9: memref<3x24x4xf32, #tpu.memory_space<vmem>>, %arg10: memref<1x4xf32, #tpu.memory_space<vmem>>, %arg11: memref<1x4xf32, #tpu.memory_space<vmem>>, %arg12: memref<1x4x16x4xf32, #tpu.memory_space<vmem>>, %arg13: memref<6x18x8xf32, #tpu.memory_space<vmem>>) attributes {dimension_semantics = [#tpu.dimension_semantics<parallel>, #tpu.dimension_semantics<parallel>], iteration_bounds = array<i64: 2, 4>, scalar_prefetch = 0 : i64, scratch_operands = 1 : i64, tpu.core_type = #tpu.core_type<tc>, window_params = [{transform_indices = @transform_0, window_bounds = array<i64: 1, 4, 16, 4>}, {transform_indices = @transform_1, window_bounds = array<i64: 1, 1, 16, 4>}, {transform_indices = @transform_2, window_bounds = array<i64: 1, 1, 16, 4>}, {transform_indices = @transform_3, window_bounds = array<i64: 1, 2, 8, 4>}, {transform_indices = @transform_4, window_bounds = array<i64: 1, 1, 8, 4>}, {transform_indices = @transform_5, window_bounds = array<i64: 1, 1, 8, 4>}, {transform_indices = @transform_6, window_bounds = array<i64: 1, 1, 4>}, {pipeline_mode = #tpu.pipeline_mode<synchronous>, transform_indices = @transform_7, window_bounds = array<i64: 3, 24, 4>}, {pipeline_mode = #tpu.pipeline_mode<synchronous>, transform_indices = @transform_8, window_bounds = array<i64: 1, 4>}, {pipeline_mode = #tpu.pipeline_mode<synchronous>, transform_indices = @transform_9, window_bounds = array<i64: 1, 4>}, {transform_indices = @transform_10, window_bounds = array<i64: 1, 4, 16, 4>}]} {
    %c0_i32 = arith.constant 0 : i32
    %0 = arith.cmpi sgt, %arg1, %c0_i32 : i32
    %1 = arith.extui %0 : i1 to i32
    %2 = arith.sitofp %1 : i32 to f32
    %c3_i32 = arith.constant 3 : i32
    %3 = arith.cmpi slt, %arg1, %c3_i32 : i32
    %4 = arith.extui %3 : i1 to i32
    %5 = arith.sitofp %4 : i32 to f32
    %c0 = arith.constant 0 : index
    %c0_0 = arith.constant 0 : index
    %c0_1 = arith.constant 0 : index
    %6 = vector.load %arg8[%c0, %c0_0, %c0_1] : memref<1x1x4xf32, #tpu.memory_space<vmem>>, vector<1x1x4xf32>
    %cst = arith.constant 0.000000e+00 : f32
    %7 = vector.broadcast %cst : f32 to vector<6x1x8xf32>
    %c0_2 = arith.constant 0 : index
    %c0_3 = arith.constant 0 : index
    %c0_4 = arith.constant 0 : index
    %8 = vector.load %arg13[%c0_2, %c0_3, %c0_4] : memref<6x18x8xf32, #tpu.memory_space<vmem>>, vector<6x1x8xf32>
    tpu.vector_store %arg13[%c0_2, %c0_3, %c0_4], %7 {strides = array<i32>} : memref<6x18x8xf32, #tpu.memory_space<vmem>>, vector<6x1x8xf32>,
    %cst_5 = arith.constant 0.000000e+00 : f32
    %9 = vector.broadcast %cst_5 : f32 to vector<6x1x8xf32>
    %c0_6 = arith.constant 0 : index
    %c17 = arith.constant 17 : index
    %c0_7 = arith.constant 0 : index
    %10 = vector.load %arg13[%c0_6, %c17, %c0_7] : memref<6x18x8xf32, #tpu.memory_space<vmem>>, vector<6x1x8xf32>
    tpu.vector_store %arg13[%c0_6, %c17, %c0_7], %9 {strides = array<i32>} : memref<6x18x8xf32, #tpu.memory_space<vmem>>, vector<6x1x8xf32>,
    %c0_8 = arith.constant 0 : index
    %c0_9 = arith.constant 0 : index
    %c0_10 = arith.constant 0 : index
    %c0_11 = arith.constant 0 : index
    %11 = vector.load %arg2[%c0_8, %c0_9, %c0_10, %c0_11] : memref<1x4x16x4xf32, #tpu.memory_space<vmem>>, vector<1x4x16x4xf32>
    %12 = vector.shape_cast %11 : vector<1x4x16x4xf32> to vector<4x16x4xf32>
    %13 = vector.broadcast %6 : vector<1x1x4xf32> to vector<4x16x4xf32>
    %14 = arith.mulf %12, %13 : vector<4x16x4xf32>
    %cst_12 = arith.constant 0.000000e+00 : f32
    %15 = vector.broadcast %cst_12 : f32 to vector<4x16x4xf32>
    %16 = arith.maximumf %14, %15 : vector<4x16x4xf32>
    %c1 = arith.constant 1 : index
    %c1_13 = arith.constant 1 : index
    %c0_14 = arith.constant 0 : index
    %17 = vector.load %arg13[%c1, %c1_13, %c0_14] : memref<6x18x8xf32, #tpu.memory_space<vmem>>, vector<4x16x4xf32>
    tpu.vector_store %arg13[%c1, %c1_13, %c0_14], %16 {strides = array<i32>} : memref<6x18x8xf32, #tpu.memory_space<vmem>>, vector<4x16x4xf32>,
    %c0_15 = arith.constant 0 : index
    %c0_16 = arith.constant 0 : index
    %c0_17 = arith.constant 0 : index
    %c0_18 = arith.constant 0 : index
    %18 = vector.load %arg5[%c0_15, %c0_16, %c0_17, %c0_18] : memref<1x2x8x4xf32, #tpu.memory_space<vmem>>, vector<1x2x8x4xf32>
    %19 = vector.shape_cast %18 : vector<1x2x8x4xf32> to vector<2x8x4xf32>
    %20 = vector.shape_cast %19 : vector<2x8x4xf32> to vector<2x8x1x4xf32>
    %21 = vector.broadcast %20 : vector<2x8x1x4xf32> to vector<2x8x2x4xf32>
    %22 = vector.shape_cast %21 : vector<2x8x2x4xf32> to vector<2x16x4xf32>
    %23 = vector.shape_cast %22 : vector<2x16x4xf32> to vector<2x1x16x4xf32>
    %24 = vector.broadcast %23 : vector<2x1x16x4xf32> to vector<2x2x16x4xf32>
    %25 = vector.shape_cast %24 : vector<2x2x16x4xf32> to vector<4x16x4xf32>
    %c1_19 = arith.constant 1 : index
    %c1_20 = arith.constant 1 : index
    %c4 = arith.constant 4 : index
    %26 = vector.load %arg13[%c1_19, %c1_20, %c4] : memref<6x18x8xf32, #tpu.memory_space<vmem>>, vector<4x16x4xf32>
    tpu.vector_store %arg13[%c1_19, %c1_20, %c4], %25 {strides = array<i32>} : memref<6x18x8xf32, #tpu.memory_space<vmem>>, vector<4x16x4xf32>,
    %c0_21 = arith.constant 0 : index
    %c0_22 = arith.constant 0 : index
    %c0_23 = arith.constant 0 : index
    %c0_24 = arith.constant 0 : index
    %27 = vector.load %arg3[%c0_21, %c0_22, %c0_23, %c0_24] : memref<1x1x16x4xf32, #tpu.memory_space<vmem>>, vector<1x1x16x4xf32>
    %28 = vector.shape_cast %27 : vector<1x1x16x4xf32> to vector<1x16x4xf32>
    %29 = vector.broadcast %6 : vector<1x1x4xf32> to vector<1x16x4xf32>
    %30 = arith.mulf %28, %29 : vector<1x16x4xf32>
    %cst_25 = arith.constant 0.000000e+00 : f32
    %31 = vector.broadcast %cst_25 : f32 to vector<1x16x4xf32>
    %32 = arith.maximumf %30, %31 : vector<1x16x4xf32>
    %33 = vector.broadcast %2 : f32 to vector<1x16x4xf32>
    %34 = arith.mulf %32, %33 : vector<1x16x4xf32>
    %c0_26 = arith.constant 0 : index
    %c1_27 = arith.constant 1 : index
    %c0_28 = arith.constant 0 : index
    %35 = vector.load %arg13[%c0_26, %c1_27, %c0_28] : memref<6x18x8xf32, #tpu.memory_space<vmem>>, vector<1x16x4xf32>
    tpu.vector_store %arg13[%c0_26, %c1_27, %c0_28], %34 {strides = array<i32>} : memref<6x18x8xf32, #tpu.memory_space<vmem>>, vector<1x16x4xf32>,
    %c0_29 = arith.constant 0 : index
    %c0_30 = arith.constant 0 : index
    %c0_31 = arith.constant 0 : index
    %c0_32 = arith.constant 0 : index
    %36 = vector.load %arg6[%c0_29, %c0_30, %c0_31, %c0_32] : memref<1x1x8x4xf32, #tpu.memory_space<vmem>>, vector<1x1x8x4xf32>
    %37 = vector.shape_cast %36 : vector<1x1x8x4xf32> to vector<1x8x4xf32>
    %38 = vector.shape_cast %37 : vector<1x8x4xf32> to vector<1x8x1x4xf32>
    %39 = vector.broadcast %38 : vector<1x8x1x4xf32> to vector<1x8x2x4xf32>
    %40 = vector.shape_cast %39 : vector<1x8x2x4xf32> to vector<1x16x4xf32>
    %41 = vector.broadcast %2 : f32 to vector<1x16x4xf32>
    %42 = arith.mulf %40, %41 : vector<1x16x4xf32>
    %c0_33 = arith.constant 0 : index
    %c1_34 = arith.constant 1 : index
    %c4_35 = arith.constant 4 : index
    %43 = vector.load %arg13[%c0_33, %c1_34, %c4_35] : memref<6x18x8xf32, #tpu.memory_space<vmem>>, vector<1x16x4xf32>
    tpu.vector_store %arg13[%c0_33, %c1_34, %c4_35], %42 {strides = array<i32>} : memref<6x18x8xf32, #tpu.memory_space<vmem>>, vector<1x16x4xf32>,
    %c0_36 = arith.constant 0 : index
    %c0_37 = arith.constant 0 : index
    %c0_38 = arith.constant 0 : index
    %c0_39 = arith.constant 0 : index
    %44 = vector.load %arg4[%c0_36, %c0_37, %c0_38, %c0_39] : memref<1x1x16x4xf32, #tpu.memory_space<vmem>>, vector<1x1x16x4xf32>
    %45 = vector.shape_cast %44 : vector<1x1x16x4xf32> to vector<1x16x4xf32>
    %46 = vector.broadcast %6 : vector<1x1x4xf32> to vector<1x16x4xf32>
    %47 = arith.mulf %45, %46 : vector<1x16x4xf32>
    %cst_40 = arith.constant 0.000000e+00 : f32
    %48 = vector.broadcast %cst_40 : f32 to vector<1x16x4xf32>
    %49 = arith.maximumf %47, %48 : vector<1x16x4xf32>
    %50 = vector.broadcast %5 : f32 to vector<1x16x4xf32>
    %51 = arith.mulf %49, %50 : vector<1x16x4xf32>
    %c5 = arith.constant 5 : index
    %c1_41 = arith.constant 1 : index
    %c0_42 = arith.constant 0 : index
    %52 = vector.load %arg13[%c5, %c1_41, %c0_42] : memref<6x18x8xf32, #tpu.memory_space<vmem>>, vector<1x16x4xf32>
    tpu.vector_store %arg13[%c5, %c1_41, %c0_42], %51 {strides = array<i32>} : memref<6x18x8xf32, #tpu.memory_space<vmem>>, vector<1x16x4xf32>,
    %c0_43 = arith.constant 0 : index
    %c0_44 = arith.constant 0 : index
    %c0_45 = arith.constant 0 : index
    %c0_46 = arith.constant 0 : index
    %53 = vector.load %arg7[%c0_43, %c0_44, %c0_45, %c0_46] : memref<1x1x8x4xf32, #tpu.memory_space<vmem>>, vector<1x1x8x4xf32>
    %54 = vector.shape_cast %53 : vector<1x1x8x4xf32> to vector<1x8x4xf32>
    %55 = vector.shape_cast %54 : vector<1x8x4xf32> to vector<1x8x1x4xf32>
    %56 = vector.broadcast %55 : vector<1x8x1x4xf32> to vector<1x8x2x4xf32>
    %57 = vector.shape_cast %56 : vector<1x8x2x4xf32> to vector<1x16x4xf32>
    %58 = vector.broadcast %5 : f32 to vector<1x16x4xf32>
    %59 = arith.mulf %57, %58 : vector<1x16x4xf32>
    %c5_47 = arith.constant 5 : index
    %c1_48 = arith.constant 1 : index
    %c4_49 = arith.constant 4 : index
    %60 = vector.load %arg13[%c5_47, %c1_48, %c4_49] : memref<6x18x8xf32, #tpu.memory_space<vmem>>, vector<1x16x4xf32>
    tpu.vector_store %arg13[%c5_47, %c1_48, %c4_49], %59 {strides = array<i32>} : memref<6x18x8xf32, #tpu.memory_space<vmem>>, vector<1x16x4xf32>,
    %cst_50 = arith.constant 0.000000e+00 : f32
    %61 = vector.broadcast %cst_50 : f32 to vector<64x4xf32>
    %c0_51 = arith.constant 0 : index
    %c0_52 = arith.constant 0 : index
    %c0_53 = arith.constant 0 : index
    %62 = vector.load %arg13[%c0_51, %c0_52, %c0_53] : memref<6x18x8xf32, #tpu.memory_space<vmem>>, vector<4x18x8xf32>
    %63 = vector.extract_strided_slice %62 {offsets = [0, 0, 0], sizes = [4, 16, 8], strides = [1, 1, 1]} : vector<4x18x8xf32> to vector<4x16x8xf32>
    %64 = vector.extract_strided_slice %62 {offsets = [0, 1, 0], sizes = [4, 16, 8], strides = [1, 1, 1]} : vector<4x18x8xf32> to vector<4x16x8xf32>
    %65 = vector.extract_strided_slice %62 {offsets = [0, 2, 0], sizes = [4, 16, 8], strides = [1, 1, 1]} : vector<4x18x8xf32> to vector<4x16x8xf32>
    %66 = tpu.concatenate %63, %64, %65 in 2 : vector<4x16x8xf32>, vector<4x16x8xf32>, vector<4x16x8xf32> -> vector<4x16x24xf32>
    %67 = vector.shape_cast %66 : vector<4x16x24xf32> to vector<64x24xf32>
    %c0_54 = arith.constant 0 : index
    %c0_55 = arith.constant 0 : index
    %c0_56 = arith.constant 0 : index
    %68 = vector.load %arg9[%c0_54, %c0_55, %c0_56] : memref<3x24x4xf32, #tpu.memory_space<vmem>>, vector<1x24x4xf32>
    %69 = vector.shape_cast %68 : vector<1x24x4xf32> to vector<24x4xf32>
    %cst_57 = arith.constant dense<0.000000e+00> : vector<64x4xf32>
    %70 = tpu.matmul %67, %69, %cst_57 {dimension_numbers = #tpu.dot_dimension_numbers<[1], [0], [0], [1], [0, 0, 1, 1], [], []>} : vector<64x24xf32>, vector<24x4xf32>, vector<64x4xf32> -> vector<64x4xf32>
    %71 = arith.addf %61, %70 : vector<64x4xf32>
    %c1_58 = arith.constant 1 : index
    %c0_59 = arith.constant 0 : index
    %c0_60 = arith.constant 0 : index
    %72 = vector.load %arg13[%c1_58, %c0_59, %c0_60] : memref<6x18x8xf32, #tpu.memory_space<vmem>>, vector<4x18x8xf32>
    %73 = vector.extract_strided_slice %72 {offsets = [0, 0, 0], sizes = [4, 16, 8], strides = [1, 1, 1]} : vector<4x18x8xf32> to vector<4x16x8xf32>
    %74 = vector.extract_strided_slice %72 {offsets = [0, 1, 0], sizes = [4, 16, 8], strides = [1, 1, 1]} : vector<4x18x8xf32> to vector<4x16x8xf32>
    %75 = vector.extract_strided_slice %72 {offsets = [0, 2, 0], sizes = [4, 16, 8], strides = [1, 1, 1]} : vector<4x18x8xf32> to vector<4x16x8xf32>
    %76 = tpu.concatenate %73, %74, %75 in 2 : vector<4x16x8xf32>, vector<4x16x8xf32>, vector<4x16x8xf32> -> vector<4x16x24xf32>
    %77 = vector.shape_cast %76 : vector<4x16x24xf32> to vector<64x24xf32>
    %c1_61 = arith.constant 1 : index
    %c0_62 = arith.constant 0 : index
    %c0_63 = arith.constant 0 : index
    %78 = vector.load %arg9[%c1_61, %c0_62, %c0_63] : memref<3x24x4xf32, #tpu.memory_space<vmem>>, vector<1x24x4xf32>
    %79 = vector.shape_cast %78 : vector<1x24x4xf32> to vector<24x4xf32>
    %cst_64 = arith.constant dense<0.000000e+00> : vector<64x4xf32>
    %80 = tpu.matmul %77, %79, %cst_64 {dimension_numbers = #tpu.dot_dimension_numbers<[1], [0], [0], [1], [0, 0, 1, 1], [], []>} : vector<64x24xf32>, vector<24x4xf32>, vector<64x4xf32> -> vector<64x4xf32>
    %81 = arith.addf %71, %80 : vector<64x4xf32>
    %c2 = arith.constant 2 : index
    %c0_65 = arith.constant 0 : index
    %c0_66 = arith.constant 0 : index
    %82 = vector.load %arg13[%c2, %c0_65, %c0_66] : memref<6x18x8xf32, #tpu.memory_space<vmem>>, vector<4x18x8xf32>
    %83 = vector.extract_strided_slice %82 {offsets = [0, 0, 0], sizes = [4, 16, 8], strides = [1, 1, 1]} : vector<4x18x8xf32> to vector<4x16x8xf32>
    %84 = vector.extract_strided_slice %82 {offsets = [0, 1, 0], sizes = [4, 16, 8], strides = [1, 1, 1]} : vector<4x18x8xf32> to vector<4x16x8xf32>
    %85 = vector.extract_strided_slice %82 {offsets = [0, 2, 0], sizes = [4, 16, 8], strides = [1, 1, 1]} : vector<4x18x8xf32> to vector<4x16x8xf32>
    %86 = tpu.concatenate %83, %84, %85 in 2 : vector<4x16x8xf32>, vector<4x16x8xf32>, vector<4x16x8xf32> -> vector<4x16x24xf32>
    %87 = vector.shape_cast %86 : vector<4x16x24xf32> to vector<64x24xf32>
    %c2_67 = arith.constant 2 : index
    %c0_68 = arith.constant 0 : index
    %c0_69 = arith.constant 0 : index
    %88 = vector.load %arg9[%c2_67, %c0_68, %c0_69] : memref<3x24x4xf32, #tpu.memory_space<vmem>>, vector<1x24x4xf32>
    %89 = vector.shape_cast %88 : vector<1x24x4xf32> to vector<24x4xf32>
    %cst_70 = arith.constant dense<0.000000e+00> : vector<64x4xf32>
    %90 = tpu.matmul %87, %89, %cst_70 {dimension_numbers = #tpu.dot_dimension_numbers<[1], [0], [0], [1], [0, 0, 1, 1], [], []>} : vector<64x24xf32>, vector<24x4xf32>, vector<64x4xf32> -> vector<64x4xf32>
    %91 = arith.addf %81, %90 : vector<64x4xf32>
    %c0_71 = arith.constant 0 : index
    %c0_72 = arith.constant 0 : index
    %92 = vector.load %arg10[%c0_71, %c0_72] : memref<1x4xf32, #tpu.memory_space<vmem>>, vector<1x4xf32>
    %93 = vector.broadcast %92 : vector<1x4xf32> to vector<64x4xf32>
    %94 = arith.mulf %91, %93 : vector<64x4xf32>
    %c0_73 = arith.constant 0 : index
    %c0_74 = arith.constant 0 : index
    %95 = vector.load %arg11[%c0_73, %c0_74] : memref<1x4xf32, #tpu.memory_space<vmem>>, vector<1x4xf32>
    %96 = vector.broadcast %95 : vector<1x4xf32> to vector<64x4xf32>
    %97 = arith.addf %94, %96 : vector<64x4xf32>
    %cst_75 = arith.constant 0.000000e+00 : f32
    %98 = vector.broadcast %cst_75 : f32 to vector<64x4xf32>
    %99 = arith.maximumf %97, %98 : vector<64x4xf32>
    %100 = vector.shape_cast %99 : vector<64x4xf32> to vector<4x16x4xf32>
    %c0_76 = arith.constant 0 : index
    %c0_77 = arith.constant 0 : index
    %c0_78 = arith.constant 0 : index
    %c0_79 = arith.constant 0 : index
    %101 = vector.load %arg12[%c0_76, %c0_77, %c0_78, %c0_79] : memref<1x4x16x4xf32, #tpu.memory_space<vmem>>, vector<1x4x16x4xf32>
    %102 = vector.shape_cast %101 : vector<1x4x16x4xf32> to vector<4x16x4xf32>
    %103 = vector.shape_cast %100 : vector<4x16x4xf32> to vector<1x4x16x4xf32>
    tpu.vector_store %arg12[%c0_76, %c0_77, %c0_78, %c0_79], %103 {strides = array<i32>} : memref<1x4x16x4xf32, #tpu.memory_space<vmem>>, vector<1x4x16x4xf32>,
    return
  }
  func.func @transform_0(%arg0: i32, %arg1: i32) -> (i32, i32, i32, i32) {
    %c0_i32 = arith.constant 0 : i32
    %c0_i32_0 = arith.constant 0 : i32
    %c0_i32_1 = arith.constant 0 : i32
    return %arg0, %arg1, %c0_i32, %c0_i32_0 : i32, i32, i32, i32
  }
  func.func @transform_1(%arg0: i32, %arg1: i32) -> (i32, i32, i32, i32) {
    %c4_i32 = arith.constant 4 : i32
    %0 = arith.muli %arg1, %c4_i32 : i32
    %c1_i32 = arith.constant 1 : i32
    %1 = arith.subi %0, %c1_i32 : i32
    %c0_i32 = arith.constant 0 : i32
    %2 = arith.maxsi %1, %c0_i32 : i32
    %c0_i32_0 = arith.constant 0 : i32
    %c0_i32_1 = arith.constant 0 : i32
    %c0_i32_2 = arith.constant 0 : i32
    return %arg0, %2, %c0_i32_0, %c0_i32_1 : i32, i32, i32, i32
  }
  func.func @transform_2(%arg0: i32, %arg1: i32) -> (i32, i32, i32, i32) {
    %c4_i32 = arith.constant 4 : i32
    %0 = arith.muli %arg1, %c4_i32 : i32
    %c4_i32_0 = arith.constant 4 : i32
    %1 = arith.addi %0, %c4_i32_0 : i32
    %c15_i32 = arith.constant 15 : i32
    %2 = arith.minsi %1, %c15_i32 : i32
    %c0_i32 = arith.constant 0 : i32
    %c0_i32_1 = arith.constant 0 : i32
    %c0_i32_2 = arith.constant 0 : i32
    return %arg0, %2, %c0_i32, %c0_i32_1 : i32, i32, i32, i32
  }
  func.func @transform_3(%arg0: i32, %arg1: i32) -> (i32, i32, i32, i32) {
    %c0_i32 = arith.constant 0 : i32
    %c0_i32_0 = arith.constant 0 : i32
    %c0_i32_1 = arith.constant 0 : i32
    return %arg0, %arg1, %c0_i32, %c0_i32_0 : i32, i32, i32, i32
  }
  func.func @transform_4(%arg0: i32, %arg1: i32) -> (i32, i32, i32, i32) {
    %c2_i32 = arith.constant 2 : i32
    %0 = arith.muli %arg1, %c2_i32 : i32
    %c1_i32 = arith.constant 1 : i32
    %1 = arith.subi %0, %c1_i32 : i32
    %c0_i32 = arith.constant 0 : i32
    %2 = arith.maxsi %1, %c0_i32 : i32
    %c0_i32_0 = arith.constant 0 : i32
    %c0_i32_1 = arith.constant 0 : i32
    %c0_i32_2 = arith.constant 0 : i32
    return %arg0, %2, %c0_i32_0, %c0_i32_1 : i32, i32, i32, i32
  }
  func.func @transform_5(%arg0: i32, %arg1: i32) -> (i32, i32, i32, i32) {
    %c2_i32 = arith.constant 2 : i32
    %0 = arith.muli %arg1, %c2_i32 : i32
    %c2_i32_0 = arith.constant 2 : i32
    %1 = arith.addi %0, %c2_i32_0 : i32
    %c7_i32 = arith.constant 7 : i32
    %2 = arith.minsi %1, %c7_i32 : i32
    %c0_i32 = arith.constant 0 : i32
    %c0_i32_1 = arith.constant 0 : i32
    %c0_i32_2 = arith.constant 0 : i32
    return %arg0, %2, %c0_i32, %c0_i32_1 : i32, i32, i32, i32
  }
  func.func @transform_6(%arg0: i32, %arg1: i32) -> (i32, i32, i32) {
    %c0_i32 = arith.constant 0 : i32
    %c0_i32_0 = arith.constant 0 : i32
    %c0_i32_1 = arith.constant 0 : i32
    return %arg0, %c0_i32, %c0_i32_0 : i32, i32, i32
  }
  func.func @transform_7(%arg0: i32, %arg1: i32) -> (i32, i32, i32) {
    %c0_i32 = arith.constant 0 : i32
    %c0_i32_0 = arith.constant 0 : i32
    %c0_i32_1 = arith.constant 0 : i32
    %c0_i32_2 = arith.constant 0 : i32
    return %c0_i32, %c0_i32_0, %c0_i32_1 : i32, i32, i32
  }
  func.func @transform_8(%arg0: i32, %arg1: i32) -> (i32, i32) {
    %c0_i32 = arith.constant 0 : i32
    %c0_i32_0 = arith.constant 0 : i32
    %c0_i32_1 = arith.constant 0 : i32
    return %c0_i32, %c0_i32_0 : i32, i32
  }
  func.func @transform_9(%arg0: i32, %arg1: i32) -> (i32, i32) {
    %c0_i32 = arith.constant 0 : i32
    %c0_i32_0 = arith.constant 0 : i32
    %c0_i32_1 = arith.constant 0 : i32
    return %c0_i32, %c0_i32_0 : i32, i32
  }
  func.func @transform_10(%arg0: i32, %arg1: i32) -> (i32, i32, i32, i32) {
    %c0_i32 = arith.constant 0 : i32
    %c0_i32_0 = arith.constant 0 : i32
    %c0_i32_1 = arith.constant 0 : i32
    return %arg0, %arg1, %c0_i32, %c0_i32_0 : i32, i32, i32, i32
  }
}

</mosaic_0001>

<llo_original>
// kernel: tpu_custom_call.1
$region0: #{tpu_custom_call.1}
  #allocation0 [shape = 'u32[]', space=smem, size = 0x4, offset = 0x4, fixed_abs, tag = 'smem constant byte address 0x4 - core index']
  #allocation1 [shape = 'u32[72,128]{1,0:T(1,128)}', space=vmem, size = 0x9000, scoped, tag = 'internal scratch']
  #allocation2 [shape = 'f32[6,18,8]{2,1,0:T(8,128)}', space=vmem, size = 0x12000, scoped, tag = 'scratch operand']
  %s0 = inlined_call_operand.vmem [shape: f32[2,16,16,4], index: 0, kind: input, shape index: {}]
  %s1 = inlined_call_operand.vmem [shape: f32[2,16,16,4], index: 1, kind: input, shape index: {}]
  %s2 = inlined_call_operand.vmem [shape: f32[2,16,16,4], index: 2, kind: input, shape index: {}]
  %s3 = inlined_call_operand.vmem [shape: f32[2,8,8,4], index: 3, kind: input, shape index: {}]
  %s4 = inlined_call_operand.vmem [shape: f32[2,8,8,4], index: 4, kind: input, shape index: {}]
  %s5 = inlined_call_operand.vmem [shape: f32[2,8,8,4], index: 5, kind: input, shape index: {}]
  %s6 = inlined_call_operand.vmem [shape: f32[2,1,4], index: 6, kind: input, shape index: {}]
  %s7 = inlined_call_operand.vmem [shape: f32[3,24,4], index: 7, kind: input, shape index: {}]
  %s8 = inlined_call_operand.vmem [shape: f32[1,4], index: 8, kind: input, shape index: {}]
  %s9 = inlined_call_operand.vmem [shape: f32[1,4], index: 9, kind: input, shape index: {}]
  %s10 = inlined_call_operand.vmem [shape: f32[2,16,16,4], index: 10, kind: output, shape index: {}]
  %s11 = sld [smem:[#allocation0]]
  $region73: #{tpu_custom_call.1} parent=0
    _
  %s13 = ssub.s32 1, %s11
  %s14 = scalar_select 0, %s13, %s11
  loop: start=0, step=1, limit=10
  $region2: #{tpu_custom_call.1} parent=0 // loop_pre_header
    _
  $region3: #{tpu_custom_call.1} parent=0 // loop_header
    %s16 = sphi 0, %s20
    %p17 = scmp.ge.s32.totalorder %s16, 10
    %s23 = sphi 0, %s35
    %s24 = sphi 0, %s31
    %s25 = sphi 0, %s23
    %s26 = sphi 0, %s24
    %s27 = sphi 0, %s25
    %s28 = sphi 0, %s26
    %s40 = sphi 0, %s42
    %s43 = sphi 0, %s40
    %s44 = sphi 0, %s43
    %s60 = sphi 0, %s44
    %s76 = sphi 0, %s78
    %s79 = sphi 0, %s76
    %s80 = sphi 0, %s79
    %s96 = sphi 0, %s80
    %s112 = sphi 0, %s114
    %s115 = sphi 0, %s112
    %s116 = sphi 0, %s115
    %s132 = sphi 0, %s116
    %s140 = sphi 0, %s142
    %s143 = sphi 0, %s140
    %s144 = sphi 0, %s143
    %s160 = sphi 0, %s144
    %s176 = sphi 0, %s178
    %s179 = sphi 0, %s176
    %s180 = sphi 0, %s179
    %s196 = sphi 0, %s180
    %s212 = sphi 0, %s214
    %s215 = sphi 0, %s212
    %s216 = sphi 0, %s215
    %s232 = sphi 0, %s216
    %s238 = sphi 0, %s240
    %s241 = sphi 0, %s238
    %s242 = sphi 0, %s241
    %s258 = sphi 0, %s242
    %s262 = sphi 0, %s262
    %s264 = sphi 0, %s262
    %s265 = sphi 0, %s264
    %s279 = sphi 0, %s265
    %s283 = sphi 0, %s283
    %s285 = sphi 0, %s283
    %s286 = sphi 0, %s285
    %s300 = sphi 0, %s286
    %s304 = sphi 0, %s304
    %s306 = sphi 0, %s304
    %s307 = sphi 0, %s306
    %s321 = sphi 0, %s307
    %s329 = sphi 0, %s331
    %s332 = sphi 0, %s329
    %s333 = sphi 0, %s332
    %s349 = sphi 0, %s333
  $region4: #{tpu_custom_call.1} parent=0 // loop_header_branch
    %19 = sbr.rel (%p17) target = $region8
  $region5: #{tpu_custom_call.1} parent=0 // loop_body
    %s21 = ssub.s32 %s16, 1
    %s22 = ssub.s32 %s16, 2
    %s29 = sadd.s32 1, %s24
    %p30 = scmp.ge.s32.totalorder %s29, 4
    %s31 = scalar_select %p30, 0, %s29
    %s32 = sadd.s32 1, %s23
    %s33 = scalar_select %p30, %s32, %s23
    %p34 = scmp.ge.s32.totalorder %s33, 2
    %s35 = scalar_select %p34, 0, %s33
    %s36 = ssub.s32 %s23, %s35
    %s37 = ssub.s32 %s24, %s31
    %s38 = sor.u32 %s36, %s37
    %p39 = scmp.eq.s32.totalorder %s38, 0
    %s41 = sadd.s32 %s40, 1
    %s42 = scalar_select %p39, %s40, %s41
    %p45 = pneg %p39
    %p46 = scmp.eq.s32.totalorder %s16, 7
    %p47 = por %p45, %p46
    %p48 = scmp.ne.s32.totalorder %s40, %s43
    %p49 = scmp.eq.s32.totalorder %s16, 0
    %p50 = por %p48, %p49
    %p51 = scmp.ne.s32.totalorder %s40, %s43
    %p52 = scmp.eq.s32.totalorder %s21, 7
    %p53 = por %p51, %p52
    %p54 = scmp.ne.s32.totalorder %s43, %s44
    %p55 = scmp.eq.s32.totalorder %s21, 0
    %p56 = por %p54, %p55
    %p57 = scmp.ne.s32.totalorder %s43, %s44
    %p58 = scmp.eq.s32.totalorder %s22, 7
    %p59 = por %p57, %p58
    %p61 = scmp.ne.s32.totalorder %s44, %s60
    %p62 = scmp.eq.s32.totalorder %s22, 0
    %p63 = por %p61, %p62
    %s64 = smul.u32 %s24, 4
    %s65 = ssub.s32 %s64, 1
    %p66 = scmp.gt.s32.totalorder %s65, 0
    %s67 = scalar_select %p66, %s65, 0
    %s68 = smul.u32 %s31, 4
    %s69 = ssub.s32 %s68, 1
    %p70 = scmp.gt.s32.totalorder %s69, 0
    %s71 = scalar_select %p70, %s69, 0
    %s72 = ssub.s32 %s23, %s35
    %s73 = ssub.s32 %s67, %s71
    %s74 = sor.u32 %s72, %s73
    %p75 = scmp.eq.s32.totalorder %s74, 0
    %s77 = sadd.s32 %s76, 1
    %s78 = scalar_select %p75, %s76, %s77
    %p81 = pneg %p75
    %p82 = scmp.eq.s32.totalorder %s16, 7
    %p83 = por %p81, %p82
    %p84 = scmp.ne.s32.totalorder %s76, %s79
    %p85 = scmp.eq.s32.totalorder %s16, 0
    %p86 = por %p84, %p85
    %p87 = scmp.ne.s32.totalorder %s76, %s79
    %p88 = scmp.eq.s32.totalorder %s21, 7
    %p89 = por %p87, %p88
    %p90 = scmp.ne.s32.totalorder %s79, %s80
    %p91 = scmp.eq.s32.totalorder %s21, 0
    %p92 = por %p90, %p91
    %p93 = scmp.ne.s32.totalorder %s79, %s80
    %p94 = scmp.eq.s32.totalorder %s22, 7
    %p95 = por %p93, %p94
    %p97 = scmp.ne.s32.totalorder %s80, %s96
    %p98 = scmp.eq.s32.totalorder %s22, 0
    %p99 = por %p97, %p98
    %s100 = smul.u32 %s24, 4
    %s101 = sadd.s32 %s100, 4
    %p102 = scmp.lt.s32.totalorder %s101, 15
    %s103 = scalar_select %p102, %s101, 15
    %s104 = smul.u32 %s31, 4
    %s105 = sadd.s32 %s104, 4
    %p106 = scmp.lt.s32.totalorder %s105, 15
    %s107 = scalar_select %p106, %s105, 15
    %s108 = ssub.s32 %s23, %s35
    %s109 = ssub.s32 %s103, %s107
    %s110 = sor.u32 %s108, %s109
    %p111 = scmp.eq.s32.totalorder %s110, 0
    %s113 = sadd.s32 %s112, 1
    %s114 = scalar_select %p111, %s112, %s113
    %p117 = pneg %p111
    %p118 = scmp.eq.s32.totalorder %s16, 7
    %p119 = por %p117, %p118
    %p120 = scmp.ne.s32.totalorder %s112, %s115
    %p121 = scmp.eq.s32.totalorder %s16, 0
    %p122 = por %p120, %p121
    %p123 = scmp.ne.s32.totalorder %s112, %s115
    %p124 = scmp.eq.s32.totalorder %s21, 7
    %p125 = por %p123, %p124
    %p126 = scmp.ne.s32.totalorder %s115, %s116
    %p127 = scmp.eq.s32.totalorder %s21, 0
    %p128 = por %p126, %p127
    %p129 = scmp.ne.s32.totalorder %s115, %s116
    %p130 = scmp.eq.s32.totalorder %s22, 7
    %p131 = por %p129, %p130
    %p133 = scmp.ne.s32.totalorder %s116, %s132
    %p134 = scmp.eq.s32.totalorder %s22, 0
    %p135 = por %p133, %p134
    %s136 = ssub.s32 %s23, %s35
    %s137 = ssub.s32 %s24, %s31
    %s138 = sor.u32 %s136, %s137
    %p139 = scmp.eq.s32.totalorder %s138, 0
    %s141 = sadd.s32 %s140, 1
    %s142 = scalar_select %p139, %s140, %s141
    %p145 = pneg %p139
    %p146 = scmp.eq.s32.totalorder %s16, 7
    %p147 = por %p145, %p146
    %p148 = scmp.ne.s32.totalorder %s140, %s143
    %p149 = scmp.eq.s32.totalorder %s16, 0
    %p150 = por %p148, %p149
    %p151 = scmp.ne.s32.totalorder %s140, %s143
    %p152 = scmp.eq.s32.totalorder %s21, 7
    %p153 = por %p151, %p152
    %p154 = scmp.ne.s32.totalorder %s143, %s144
    %p155 = scmp.eq.s32.totalorder %s21, 0
    %p156 = por %p154, %p155
    %p157 = scmp.ne.s32.totalorder %s143, %s144
    %p158 = scmp.eq.s32.totalorder %s22, 7
    %p159 = por %p157, %p158
    %p161 = scmp.ne.s32.totalorder %s144, %s160
    %p162 = scmp.eq.s32.totalorder %s22, 0
    %p163 = por %p161, %p162
    %s164 = smul.u32 %s24, 2
    %s165 = ssub.s32 %s164, 1
    %p166 = scmp.gt.s32.totalorder %s165, 0
    %s167 = scalar_select %p166, %s165, 0
    %s168 = smul.u32 %s31, 2
    %s169 = ssub.s32 %s168, 1
    %p170 = scmp.gt.s32.totalorder %s169, 0
    %s171 = scalar_select %p170, %s169, 0
    %s172 = ssub.s32 %s23, %s35
    %s173 = ssub.s32 %s167, %s171
    %s174 = sor.u32 %s172, %s173
    %p175 = scmp.eq.s32.totalorder %s174, 0
    %s177 = sadd.s32 %s176, 1
    %s178 = scalar_select %p175, %s176, %s177
    %p181 = pneg %p175
    %p182 = scmp.eq.s32.totalorder %s16, 7
    %p183 = por %p181, %p182
    %p184 = scmp.ne.s32.totalorder %s176, %s179
    %p185 = scmp.eq.s32.totalorder %s16, 0
    %p186 = por %p184, %p185
    %p187 = scmp.ne.s32.totalorder %s176, %s179
    %p188 = scmp.eq.s32.totalorder %s21, 7
    %p189 = por %p187, %p188
    %p190 = scmp.ne.s32.totalorder %s179, %s180
    %p191 = scmp.eq.s32.totalorder %s21, 0
    %p192 = por %p190, %p191
    %p193 = scmp.ne.s32.totalorder %s179, %s180
    %p194 = scmp.eq.s32.totalorder %s22, 7
    %p195 = por %p193, %p194
    %p197 = scmp.ne.s32.totalorder %s180, %s196
    %p198 = scmp.eq.s32.totalorder %s22, 0
    %p199 = por %p197, %p198
    %s200 = smul.u32 %s24, 2
    %s201 = sadd.s32 %s200, 2
    %p202 = scmp.lt.s32.totalorder %s201, 7
    %s203 = scalar_select %p202, %s201, 7
    %s204 = smul.u32 %s31, 2
    %s205 = sadd.s32 %s204, 2
    %p206 = scmp.lt.s32.totalorder %s205, 7
    %s207 = scalar_select %p206, %s205, 7
    %s208 = ssub.s32 %s23, %s35
    %s209 = ssub.s32 %s203, %s207
    %s210 = sor.u32 %s208, %s209
    %p211 = scmp.eq.s32.totalorder %s210, 0
    %s213 = sadd.s32 %s212, 1
    %s214 = scalar_select %p211, %s212, %s213
    %p217 = pneg %p211
    %p218 = scmp.eq.s32.totalorder %s16, 7
    %p219 = por %p217, %p218
    %p220 = scmp.ne.s32.totalorder %s212, %s215
    %p221 = scmp.eq.s32.totalorder %s16, 0
    %p222 = por %p220, %p221
    %p223 = scmp.ne.s32.totalorder %s212, %s215
    %p224 = scmp.eq.s32.totalorder %s21, 7
    %p225 = por %p223, %p224
    %p226 = scmp.ne.s32.totalorder %s215, %s216
    %p227 = scmp.eq.s32.totalorder %s21, 0
    %p228 = por %p226, %p227
    %p229 = scmp.ne.s32.totalorder %s215, %s216
    %p230 = scmp.eq.s32.totalorder %s22, 7
    %p231 = por %p229, %p230
    %p233 = scmp.ne.s32.totalorder %s216, %s232
    %p234 = scmp.eq.s32.totalorder %s22, 0
    %p235 = por %p233, %p234
    %s236 = ssub.s32 %s23, %s35
    %p237 = scmp.eq.s32.totalorder %s236, 0
    %s239 = sadd.s32 %s238, 1
    %s240 = scalar_select %p237, %s238, %s239
    %p243 = pneg %p237
    %p244 = scmp.eq.s32.totalorder %s16, 7
    %p245 = por %p243, %p244
    %p246 = scmp.ne.s32.totalorder %s238, %s241
    %p247 = scmp.eq.s32.totalorder %s16, 0
    %p248 = por %p246, %p247
    %p249 = scmp.ne.s32.totalorder %s238, %s241
    %p250 = scmp.eq.s32.totalorder %s21, 7
    %p251 = por %p249, %p250
    %p252 = scmp.ne.s32.totalorder %s241, %s242
    %p253 = scmp.eq.s32.totalorder %s21, 0
    %p254 = por %p252, %p253
    %p255 = scmp.ne.s32.totalorder %s241, %s242
    %p256 = scmp.eq.s32.totalorder %s22, 7
    %p257 = por %p255, %p256
    %p259 = scmp.ne.s32.totalorder %s242, %s258
    %p260 = scmp.eq.s32.totalorder %s22, 0
    %p261 = por %p259, %p260
    %s263 = sadd.s32 %s262, 1
    %p266 = scmp.eq.s32.totalorder %s16, 7
    %p267 = scmp.ne.s32.totalorder %s262, %s264
    %p268 = scmp.eq.s32.totalorder %s16, 0
    %p269 = por %p267, %p268
    %p270 = scmp.ne.s32.totalorder %s262, %s264
    %p271 = scmp.eq.s32.totalorder %s21, 7
    %p272 = por %p270, %p271
    %p273 = scmp.ne.s32.totalorder %s264, %s265
    %p274 = scmp.eq.s32.totalorder %s21, 0
    %p275 = por %p273, %p274
    %p276 = scmp.ne.s32.totalorder %s264, %s265
    %p277 = scmp.eq.s32.totalorder %s22, 7
    %p278 = por %p276, %p277
    %p280 = scmp.ne.s32.totalorder %s265, %s279
    %p281 = scmp.eq.s32.totalorder %s22, 0
    %p282 = por %p280, %p281
    %s284 = sadd.s32 %s283, 1
    %p287 = scmp.eq.s32.totalorder %s16, 7
    %p288 = scmp.ne.s32.totalorder %s283, %s285
    %p289 = scmp.eq.s32.totalorder %s16, 0
    %p290 = por %p288, %p289
    %p291 = scmp.ne.s32.totalorder %s283, %s285
    %p292 = scmp.eq.s32.totalorder %s21, 7
    %p293 = por %p291, %p292
    %p294 = scmp.ne.s32.totalorder %s285, %s286
    %p295 = scmp.eq.s32.totalorder %s21, 0
    %p296 = por %p294, %p295
    %p297 = scmp.ne.s32.totalorder %s285, %s286
    %p298 = scmp.eq.s32.totalorder %s22, 7
    %p299 = por %p297, %p298
    %p301 = scmp.ne.s32.totalorder %s286, %s300
    %p302 = scmp.eq.s32.totalorder %s22, 0
    %p303 = por %p301, %p302
    %s305 = sadd.s32 %s304, 1
    %p308 = scmp.eq.s32.totalorder %s16, 7
    %p309 = scmp.ne.s32.totalorder %s304, %s306
    %p310 = scmp.eq.s32.totalorder %s16, 0
    %p311 = por %p309, %p310
    %p312 = scmp.ne.s32.totalorder %s304, %s306
    %p313 = scmp.eq.s32.totalorder %s21, 7
    %p314 = por %p312, %p313
    %p315 = scmp.ne.s32.totalorder %s306, %s307
    %p316 = scmp.eq.s32.totalorder %s21, 0
    %p317 = por %p315, %p316
    %p318 = scmp.ne.s32.totalorder %s306, %s307
    %p319 = scmp.eq.s32.totalorder %s22, 7
    %p320 = por %p318, %p319
    %p322 = scmp.ne.s32.totalorder %s307, %s321
    %p323 = scmp.eq.s32.totalorder %s22, 0
    %p324 = por %p322, %p323
    %s325 = ssub.s32 %s23, %s35
    %s326 = ssub.s32 %s24, %s31
    %s327 = sor.u32 %s325, %s326
    %p328 = scmp.eq.s32.totalorder %s327, 0
    %s330 = sadd.s32 %s329, 1
    %s331 = scalar_select %p328, %s329, %s330
    %p334 = pneg %p328
    %p335 = scmp.eq.s32.totalorder %s16, 7
    %p336 = por %p334, %p335
    %p337 = scmp.ne.s32.totalorder %s329, %s332
    %p338 = scmp.eq.s32.totalorder %s16, 0
    %p339 = por %p337, %p338
    %p340 = scmp.ne.s32.totalorder %s329, %s332
    %p341 = scmp.eq.s32.totalorder %s21, 7
    %p342 = por %p340, %p341
    %p343 = scmp.ne.s32.totalorder %s332, %s333
    %p344 = scmp.eq.s32.totalorder %s21, 0
    %p345 = por %p343, %p344
    %p346 = scmp.ne.s32.totalorder %s332, %s333
    %p347 = scmp.eq.s32.totalorder %s22, 7
    %p348 = por %p346, %p347
    %p350 = scmp.ne.s32.totalorder %s333, %s349
    %p351 = scmp.eq.s32.totalorder %s22, 0
    %p352 = por %p350, %p351
    %p353 = scmp.le.s32.totalorder 1, %s16
    %p354 = scmp.lt.s32.totalorder %s16, 9
    %p355 = pnand %p353, %p354
    %p356 = pneg %p355
    // Predicated region
    $region9: #{tpu_custom_call.1} parent=5 // pred_check
      _
    $region10: #{tpu_custom_call.1} parent=5 // pred_check_branch
      %358 = sbr.rel (%p355) target = $region12
    $region11: #{tpu_custom_call.1} parent=5 // pred_region
      %s359 = ssub.s32 %s16, 1
      // Predicated region
      $region13: #{tpu_custom_call.1} parent=11 // pred_check
        %p360 = pneg %p275
      $region14: #{tpu_custom_call.1} parent=11 // pred_check_branch
        %362 = sbr.rel (%p360) target = $region16
      $region15: #{tpu_custom_call.1} parent=11 // pred_region
        _
      $region16: #{tpu_custom_call.1} parent=11 // pred_fallthru
        _
      // Predicated region
      $region17: #{tpu_custom_call.1} parent=11 // pred_check
        %p363 = pneg %p296
      $region18: #{tpu_custom_call.1} parent=11 // pred_check_branch
        %365 = sbr.rel (%p363) target = $region20
      $region19: #{tpu_custom_call.1} parent=11 // pred_region
        _
      $region20: #{tpu_custom_call.1} parent=11 // pred_fallthru
        _
      // Predicated region
      $region21: #{tpu_custom_call.1} parent=11 // pred_check
        %p366 = pneg %p317
      $region22: #{tpu_custom_call.1} parent=11 // pred_check_branch
        %368 = sbr.rel (%p366) target = $region24
      $region23: #{tpu_custom_call.1} parent=11 // pred_region
        _
      $region24: #{tpu_custom_call.1} parent=11 // pred_fallthru
        _
    $region12: #{tpu_custom_call.1} parent=5 // pred_fallthru
      _
    %p369 = scmp.lt.s32.totalorder %s16, 8
    // Predicated region
    $region25: #{tpu_custom_call.1} parent=5 // pred_check
      %p370 = pneg %p369
    $region26: #{tpu_custom_call.1} parent=5 // pred_check_branch
      %372 = sbr.rel (%p370) target = $region28
    $region27: #{tpu_custom_call.1} parent=5 // pred_region
      // Predicated region
      $region29: #{tpu_custom_call.1} parent=27 // pred_check
        %p373 = pneg %p50
      $region30: #{tpu_custom_call.1} parent=27 // pred_check_branch
        %375 = sbr.rel (%p373) target = $region32
      $region31: #{tpu_custom_call.1} parent=27 // pred_region
        %s376 = smul.u32 4, %s24
        %p377 = scmp.lt.s32.totalorder %s23, 1
        %s378 = scalar_select %p377, %s23, 1
        %p379 = scmp.lt.s32.totalorder %s376, 15
        %s380 = scalar_select %p379, %s376, 15
        %s381 = smul.addr %s380, 2
        %s382 = smul.addr %s378, 32
        %s383 = sadd.s32 %s381, %s382
        %s384 = smul.addr %s383, 8
        %s385 = scalar_lea.vmem %s0, %s384
        %s386 = smul.u32 4, %s24
      $region32: #{tpu_custom_call.1} parent=27 // pred_fallthru
        _
      // Predicated region
      $region33: #{tpu_custom_call.1} parent=27 // pred_check
        %p387 = pneg %p86
      $region34: #{tpu_custom_call.1} parent=27 // pred_check_branch
        %389 = sbr.rel (%p387) target = $region36
      $region35: #{tpu_custom_call.1} parent=27 // pred_region
        %s390 = smul.u32 %s24, 4
        %s391 = ssub.s32 %s390, 1
        %p392 = scmp.gt.s32.totalorder %s391, 0
        %s393 = scalar_select %p392, %s391, 0
        %p394 = scmp.lt.s32.totalorder %s23, 1
        %s395 = scalar_select %p394, %s23, 1
        %p396 = scmp.lt.s32.totalorder %s393, 15
        %s397 = scalar_select %p396, %s393, 15
        %s398 = smul.addr %s397, 2
        %s399 = smul.addr %s395, 32
        %s400 = sadd.s32 %s398, %s399
        %s401 = smul.addr %s400, 8
        %s402 = scalar_lea.vmem %s1, %s401
        %s403 = smul.u32 %s24, 4
        %s404 = ssub.s32 %s403, 1
        %p405 = scmp.gt.s32.totalorder %s404, 0
        %s406 = scalar_select %p405, %s404, 0
      $region36: #{tpu_custom_call.1} parent=27 // pred_fallthru
        _
      // Predicated region
      $region37: #{tpu_custom_call.1} parent=27 // pred_check
        %p407 = pneg %p122
      $region38: #{tpu_custom_call.1} parent=27 // pred_check_branch
        %409 = sbr.rel (%p407) target = $region40
      $region39: #{tpu_custom_call.1} parent=27 // pred_region
        %s410 = smul.u32 %s24, 4
        %s411 = sadd.s32 %s410, 4
        %p412 = scmp.lt.s32.totalorder %s411, 15
        %s413 = scalar_select %p412, %s411, 15
        %p414 = scmp.lt.s32.totalorder %s23, 1
        %s415 = scalar_select %p414, %s23, 1
        %p416 = scmp.lt.s32.totalorder %s413, 15
        %s417 = scalar_select %p416, %s413, 15
        %s418 = smul.addr %s417, 2
        %s419 = smul.addr %s415, 32
        %s420 = sadd.s32 %s418, %s419
        %s421 = smul.addr %s420, 8
        %s422 = scalar_lea.vmem %s2, %s421
        %s423 = smul.u32 %s24, 4
        %s424 = sadd.s32 %s423, 4
        %p425 = scmp.lt.s32.totalorder %s424, 15
        %s426 = scalar_select %p425, %s424, 15
      $region40: #{tpu_custom_call.1} parent=27 // pred_fallthru
        _
      // Predicated region
      $region41: #{tpu_custom_call.1} parent=27 // pred_check
        %p427 = pneg %p150
      $region42: #{tpu_custom_call.1} parent=27 // pred_check_branch
        %429 = sbr.rel (%p427) target = $region44
      $region43: #{tpu_custom_call.1} parent=27 // pred_region
        %s430 = smul.u32 2, %s24
        %p431 = scmp.lt.s32.totalorder %s23, 1
        %s432 = scalar_select %p431, %s23, 1
        %p433 = scmp.lt.s32.totalorder %s430, 7
        %s434 = scalar_select %p433, %s430, 7
        %s435 = smul.addr %s432, 8
        %s436 = sadd.s32 %s434, %s435
        %s437 = smul.addr %s436, 8
        %s438 = scalar_lea.vmem %s3, %s437
        %s439 = smul.u32 2, %s24
      $region44: #{tpu_custom_call.1} parent=27 // pred_fallthru
        _
      // Predicated region
      $region45: #{tpu_custom_call.1} parent=27 // pred_check
        %p440 = pneg %p186
      $region46: #{tpu_custom_call.1} parent=27 // pred_check_branch
        %442 = sbr.rel (%p440) target = $region48
      $region47: #{tpu_custom_call.1} parent=27 // pred_region
        %s443 = smul.u32 %s24, 2
        %s444 = ssub.s32 %s443, 1
        %p445 = scmp.gt.s32.totalorder %s444, 0
        %s446 = scalar_select %p445, %s444, 0
        %p447 = scmp.lt.s32.totalorder %s23, 1
        %s448 = scalar_select %p447, %s23, 1
        %p449 = scmp.lt.s32.totalorder %s446, 7
        %s450 = scalar_select %p449, %s446, 7
        %s451 = smul.addr %s448, 8
        %s452 = sadd.s32 %s450, %s451
        %s453 = smul.addr %s452, 8
        %s454 = scalar_lea.vmem %s4, %s453
        %s455 = smul.u32 %s24, 2
        %s456 = ssub.s32 %s455, 1
        %p457 = scmp.gt.s32.totalorder %s456, 0
        %s458 = scalar_select %p457, %s456, 0
      $region48: #{tpu_custom_call.1} parent=27 // pred_fallthru
        _
      // Predicated region
      $region49: #{tpu_custom_call.1} parent=27 // pred_check
        %p459 = pneg %p222
      $region50: #{tpu_custom_call.1} parent=27 // pred_check_branch
        %461 = sbr.rel (%p459) target = $region52
      $region51: #{tpu_custom_call.1} parent=27 // pred_region
        %s462 = smul.u32 %s24, 2
        %s463 = sadd.s32 %s462, 2
        %p464 = scmp.lt.s32.totalorder %s463, 7
        %s465 = scalar_select %p464, %s463, 7
        %p466 = scmp.lt.s32.totalorder %s23, 1
        %s467 = scalar_select %p466, %s23, 1
        %p468 = scmp.lt.s32.totalorder %s465, 7
        %s469 = scalar_select %p468, %s465, 7
        %s470 = smul.addr %s467, 8
        %s471 = sadd.s32 %s469, %s470
        %s472 = smul.addr %s471, 8
        %s473 = scalar_lea.vmem %s5, %s472
        %s474 = smul.u32 %s24, 2
        %s475 = sadd.s32 %s474, 2
        %p476 = scmp.lt.s32.totalorder %s475, 7
        %s477 = scalar_select %p476, %s475, 7
      $region52: #{tpu_custom_call.1} parent=27 // pred_fallthru
        _
      // Predicated region
      $region53: #{tpu_custom_call.1} parent=27 // pred_check
        %p478 = pneg %p248
      $region54: #{tpu_custom_call.1} parent=27 // pred_check_branch
        %480 = sbr.rel (%p478) target = $region56
      $region55: #{tpu_custom_call.1} parent=27 // pred_region
        %p481 = scmp.lt.s32.totalorder %s23, 1
        %s482 = scalar_select %p481, %s23, 1
        %s483 = scalar_lea.vmem %s6, %s482
      $region56: #{tpu_custom_call.1} parent=27 // pred_fallthru
        _
    $region28: #{tpu_custom_call.1} parent=5 // pred_fallthru
      _
    %p484 = scmp.le.s32.totalorder 1, %s16
    %p485 = scmp.lt.s32.totalorder %s16, 9
    %p486 = pnand %p484, %p485
    %p487 = pneg %p486
    // Predicated region
    $region57: #{tpu_custom_call.1} parent=5 // pred_check
      _
    $region58: #{tpu_custom_call.1} parent=5 // pred_check_branch
      %489 = sbr.rel (%p486) target = $region60
    $region59: #{tpu_custom_call.1} parent=5 // pred_region
      %s490 = ssub.s32 %s16, 1
      %s491 = smul.u32 4, %s26
      %p492 = scmp.lt.s32.totalorder %s25, 1
      %s493 = scalar_select %p492, %s25, 1
      %p494 = scmp.lt.s32.totalorder %s491, 15
      %s495 = scalar_select %p494, %s491, 15
      %s496 = smul.addr %s495, 2
      %s497 = smul.addr %s493, 32
      %s498 = sadd.s32 %s496, %s497
      %s499 = smul.addr %s498, 8
      %s500 = scalar_lea.vmem %s0, %s499
      %p501 = pneg %p56
      %p502 = pneg %p53
      %s503 = smul.u32 %s26, 4
      %s504 = ssub.s32 %s503, 1
      %p505 = scmp.gt.s32.totalorder %s504, 0
      %s506 = scalar_select %p505, %s504, 0
      %p507 = scmp.lt.s32.totalorder %s25, 1
      %s508 = scalar_select %p507, %s25, 1
      %p509 = scmp.lt.s32.totalorder %s506, 15
      %s510 = scalar_select %p509, %s506, 15
      %s511 = smul.addr %s510, 2
      %s512 = smul.addr %s508, 32
      %s513 = sadd.s32 %s511, %s512
      %s514 = smul.addr %s513, 8
      %s515 = scalar_lea.vmem %s1, %s514
      %p516 = pneg %p92
      %p517 = pneg %p89
      %s518 = smul.u32 %s26, 4
      %s519 = sadd.s32 %s518, 4
      %p520 = scmp.lt.s32.totalorder %s519, 15
      %s521 = scalar_select %p520, %s519, 15
      %p522 = scmp.lt.s32.totalorder %s25, 1
      %s523 = scalar_select %p522, %s25, 1
      %p524 = scmp.lt.s32.totalorder %s521, 15
      %s525 = scalar_select %p524, %s521, 15
      %s526 = smul.addr %s525, 2
      %s527 = smul.addr %s523, 32
      %s528 = sadd.s32 %s526, %s527
      %s529 = smul.addr %s528, 8
      %s530 = scalar_lea.vmem %s2, %s529
      %p531 = pneg %p128
      %p532 = pneg %p125
      %s533 = smul.u32 2, %s26
      %p534 = scmp.lt.s32.totalorder %s25, 1
      %s535 = scalar_select %p534, %s25, 1
      %p536 = scmp.lt.s32.totalorder %s533, 7
      %s537 = scalar_select %p536, %s533, 7
      %s538 = smul.addr %s535, 8
      %s539 = sadd.s32 %s537, %s538
      %s540 = smul.addr %s539, 8
      %s541 = scalar_lea.vmem %s3, %s540
      %p542 = pneg %p156
      %p543 = pneg %p153
      %s544 = smul.u32 %s26, 2
      %s545 = ssub.s32 %s544, 1
      %p546 = scmp.gt.s32.totalorder %s545, 0
      %s547 = scalar_select %p546, %s545, 0
      %p548 = scmp.lt.s32.totalorder %s25, 1
      %s549 = scalar_select %p548, %s25, 1
      %p550 = scmp.lt.s32.totalorder %s547, 7
      %s551 = scalar_select %p550, %s547, 7
      %s552 = smul.addr %s549, 8
      %s553 = sadd.s32 %s551, %s552
      %s554 = smul.addr %s553, 8
      %s555 = scalar_lea.vmem %s4, %s554
      %p556 = pneg %p192
      %p557 = pneg %p189
      %s558 = smul.u32 %s26, 2
      %s559 = sadd.s32 %s558, 2
      %p560 = scmp.lt.s32.totalorder %s559, 7
      %s561 = scalar_select %p560, %s559, 7
      %p562 = scmp.lt.s32.totalorder %s25, 1
      %s563 = scalar_select %p562, %s25, 1
      %p564 = scmp.lt.s32.totalorder %s561, 7
      %s565 = scalar_select %p564, %s561, 7
      %s566 = smul.addr %s563, 8
      %s567 = sadd.s32 %s565, %s566
      %s568 = smul.addr %s567, 8
      %s569 = scalar_lea.vmem %s5, %s568
      %p570 = pneg %p228
      %p571 = pneg %p225
      %p572 = scmp.lt.s32.totalorder %s25, 1
      %s573 = scalar_select %p572, %s25, 1
      %s574 = scalar_lea.vmem %s6, %s573
      %p575 = pneg %p254
      %p576 = pneg %p251
      %p577 = pneg %p275
      %p578 = pneg %p272
      %p579 = pneg %p296
      %p580 = pneg %p293
      %p581 = pneg %p317
      %p582 = pneg %p314
      %p583 = pneg %p345
      %p584 = pneg %p342
      %s585 = smul.u32 4, %s26
      %p586 = scmp.lt.s32.totalorder %s25, 1
      %s587 = scalar_select %p586, %s25, 1
      %p588 = scmp.lt.s32.totalorder %s585, 15
      %s589 = scalar_select %p588, %s585, 15
      %s590 = smul.addr %s589, 2
      %s591 = smul.addr %s587, 32
      %s592 = sadd.s32 %s590, %s591
      %s593 = smul.addr %s592, 8
      %s594 = scalar_lea.vmem %s10, %s593
      %s595 = smul.u32 4, %s26
      %p596 = scmp.lt.s32.totalorder %s25, 1
      %s597 = scalar_select %p596, %s25, 1
      %p598 = scmp.lt.s32.totalorder %s595, 15
      %s599 = scalar_select %p598, %s595, 15
      %s600 = smul.addr %s599, 2
      %s601 = smul.addr %s597, 32
      %s602 = sadd.s32 %s600, %s601
      %s603 = smul.addr %s602, 8
      %s604 = scalar_lea.vmem %s0, %s603
      %s605 = smul.u32 4, %s26
      %s606 = smul.u32 %s26, 4
      %s607 = ssub.s32 %s606, 1
      %p608 = scmp.gt.s32.totalorder %s607, 0
      %s609 = scalar_select %p608, %s607, 0
      %p610 = scmp.lt.s32.totalorder %s25, 1
      %s611 = scalar_select %p610, %s25, 1
      %p612 = scmp.lt.s32.totalorder %s609, 15
      %s613 = scalar_select %p612, %s609, 15
      %s614 = smul.addr %s613, 2
      %s615 = smul.addr %s611, 32
      %s616 = sadd.s32 %s614, %s615
      %s617 = smul.addr %s616, 8
      %s618 = scalar_lea.vmem %s1, %s617
      %s619 = smul.u32 %s26, 4
      %s620 = ssub.s32 %s619, 1
      %p621 = scmp.gt.s32.totalorder %s620, 0
      %s622 = scalar_select %p621, %s620, 0
      %s623 = smul.u32 %s26, 4
      %s624 = sadd.s32 %s623, 4
      %p625 = scmp.lt.s32.totalorder %s624, 15
      %s626 = scalar_select %p625, %s624, 15
      %p627 = scmp.lt.s32.totalorder %s25, 1
      %s628 = scalar_select %p627, %s25, 1
      %p629 = scmp.lt.s32.totalorder %s626, 15
      %s630 = scalar_select %p629, %s626, 15
      %s631 = smul.addr %s630, 2
      %s632 = smul.addr %s628, 32
      %s633 = sadd.s32 %s631, %s632
      %s634 = smul.addr %s633, 8
      %s635 = scalar_lea.vmem %s2, %s634
      %s636 = smul.u32 %s26, 4
      %s637 = sadd.s32 %s636, 4
      %p638 = scmp.lt.s32.totalorder %s637, 15
      %s639 = scalar_select %p638, %s637, 15
      %s640 = smul.u32 2, %s26
      %p641 = scmp.lt.s32.totalorder %s25, 1
      %s642 = scalar_select %p641, %s25, 1
      %p643 = scmp.lt.s32.totalorder %s640, 7
      %s644 = scalar_select %p643, %s640, 7
      %s645 = smul.addr %s642, 8
      %s646 = sadd.s32 %s644, %s645
      %s647 = smul.addr %s646, 8
      %s648 = scalar_lea.vmem %s3, %s647
      %s649 = smul.u32 2, %s26
      %s650 = smul.u32 %s26, 2
      %s651 = ssub.s32 %s650, 1
      %p652 = scmp.gt.s32.totalorder %s651, 0
      %s653 = scalar_select %p652, %s651, 0
      %p654 = scmp.lt.s32.totalorder %s25, 1
      %s655 = scalar_select %p654, %s25, 1
      %p656 = scmp.lt.s32.totalorder %s653, 7
      %s657 = scalar_select %p656, %s653, 7
      %s658 = smul.addr %s655, 8
      %s659 = sadd.s32 %s657, %s658
      %s660 = smul.addr %s659, 8
      %s661 = scalar_lea.vmem %s4, %s660
      %s662 = smul.u32 %s26, 2
      %s663 = ssub.s32 %s662, 1
      %p664 = scmp.gt.s32.totalorder %s663, 0
      %s665 = scalar_select %p664, %s663, 0
      %s666 = smul.u32 %s26, 2
      %s667 = sadd.s32 %s666, 2
      %p668 = scmp.lt.s32.totalorder %s667, 7
      %s669 = scalar_select %p668, %s667, 7
      %p670 = scmp.lt.s32.totalorder %s25, 1
      %s671 = scalar_select %p670, %s25, 1
      %p672 = scmp.lt.s32.totalorder %s669, 7
      %s673 = scalar_select %p672, %s669, 7
      %s674 = smul.addr %s671, 8
      %s675 = sadd.s32 %s673, %s674
      %s676 = smul.addr %s675, 8
      %s677 = scalar_lea.vmem %s5, %s676
      %s678 = smul.u32 %s26, 2
      %s679 = sadd.s32 %s678, 2
      %p680 = scmp.lt.s32.totalorder %s679, 7
      %s681 = scalar_select %p680, %s679, 7
      %p682 = scmp.lt.s32.totalorder %s25, 1
      %s683 = scalar_select %p682, %s25, 1
      %s684 = scalar_lea.vmem %s6, %s683
      %s685 = smul.u32 4, %s26
      %p686 = scmp.lt.s32.totalorder %s25, 1
      %s687 = scalar_select %p686, %s25, 1
      %p688 = scmp.lt.s32.totalorder %s685, 15
      %s689 = scalar_select %p688, %s685, 15
      %s690 = smul.addr %s689, 2
      %s691 = smul.addr %s687, 32
      %s692 = sadd.s32 %s690, %s691
      %s693 = smul.addr %s692, 8
      %s694 = scalar_lea.vmem %s10, %s693
      %s695 = smul.u32 4, %s26
      %p696 = scmp.gt.s32.totalorder %s26, 0
      %s697 = scalar_select %p696, 1, 0
      %s698 = scvt.s32.f32 %s697
      %p699 = scmp.lt.s32.totalorder %s26, 3
      %s700 = scalar_select %p699, 1, 0
      %s701 = scvt.s32.f32 %s700
      %v702 = vld [vmem:[%s684] sm:$0x1]
      %vm703 = vcmask 57344
      %704 = vst.msk [vmem:[#allocation2] sm:$0x1] %vm703, 0.0
      %705 = vst.msk [vmem:[#allocation2 + $0x18] sm:$0x1] %vm703, 0.0
      %706 = vst.msk [vmem:[#allocation2 + $0x30] sm:$0x1] %vm703, 0.0
      %707 = vst.msk [vmem:[#allocation2 + $0x48] sm:$0x1] %vm703, 0.0
      %708 = vst.msk [vmem:[#allocation2 + $0x60] sm:$0x1] %vm703, 0.0
      %709 = vst.msk [vmem:[#allocation2 + $0x78] sm:$0x1] %vm703, 0.0
      %710 = vst.msk [vmem:[#allocation2 + $0x11] sm:$0x1] %vm703, 0.0
      %711 = vst.msk [vmem:[#allocation2 + $0x29] sm:$0x1] %vm703, 0.0
      %712 = vst.msk [vmem:[#allocation2 + $0x41] sm:$0x1] %vm703, 0.0
      %713 = vst.msk [vmem:[#allocation2 + $0x59] sm:$0x1] %vm703, 0.0
      %714 = vst.msk [vmem:[#allocation2 + $0x71] sm:$0x1] %vm703, 0.0
      %715 = vst.msk [vmem:[#allocation2 + $0x89] sm:$0x1] %vm703, 0.0
      %v716 = vld [vmem:[%s604] sm:$0xff]
      %v717 = vld [vmem:[%s604 + $0x8] sm:$0xff]
      %v718 = vld [vmem:[%s604 + $0x10] sm:$0xff]
      %v719 = vld [vmem:[%s604 + $0x18] sm:$0xff]
      %v720 = vld [vmem:[%s604 + $0x20] sm:$0xff]
      %v721 = vld [vmem:[%s604 + $0x28] sm:$0xff]
      %v722 = vld [vmem:[%s604 + $0x30] sm:$0xff]
      %v723 = vld [vmem:[%s604 + $0x38] sm:$0xff]
      %v725 = vperm.slane %v702, 0
      %v727 = vmul.f32 %v716, %v725
      %v728 = vmul.f32 %v717, %v725
      %v729 = vmul.f32 %v718, %v725
      %v730 = vmul.f32 %v719, %v725
      %v731 = vmul.f32 %v720, %v725
      %v732 = vmul.f32 %v721, %v725
      %v733 = vmul.f32 %v722, %v725
      %v734 = vmul.f32 %v723, %v725
      %v735 = vmax.f32 %v727, 0.0
      %v736 = vmax.f32 %v728, 0.0
      %v737 = vmax.f32 %v729, 0.0
      %v738 = vmax.f32 %v730, 0.0
      %v739 = vmax.f32 %v731, 0.0
      %v740 = vmax.f32 %v732, 0.0
      %v741 = vmax.f32 %v733, 0.0
      %v742 = vmax.f32 %v734, 0.0
      %s743 = scalar_lea.vmem [#allocation2], 24
      %vm744 = vcmask 31744
      %745 = vst.msk [vmem:[%s743 + $0x1] sm:$0xff] %vm744, %v735
      %746 = vst.msk [vmem:[%s743 + $0x9] sm:$0xff] %vm744, %v736
      %747 = vst.msk [vmem:[%s743 + $0x19] sm:$0xff] %vm744, %v737
      %748 = vst.msk [vmem:[%s743 + $0x21] sm:$0xff] %vm744, %v738
      %749 = vst.msk [vmem:[%s743 + $0x31] sm:$0xff] %vm744, %v739
      %750 = vst.msk [vmem:[%s743 + $0x39] sm:$0xff] %vm744, %v740
      %751 = vst.msk [vmem:[%s743 + $0x49] sm:$0xff] %vm744, %v741
      %752 = vst.msk [vmem:[%s743 + $0x51] sm:$0xff] %vm744, %v742
      %v753 = vld [vmem:[%s648] sm:$0xff]
      %v754 = vld [vmem:[%s648 + $0x8] sm:$0xff]
      %v757 = vrot.slane %v753, 1
      %v758 = vrot.slane %v753, 2
      %v759 = vrot.slane %v753, 3
      %v760 = vrot.slane %v753, 4
      %v761 = vrot.slane %v753, 5
      %v762 = vrot.slane %v753, 6
      %v763 = vrot.slane %v753, 7
      %v764 = vrot.slane %v754, 1
      %v765 = vrot.slane %v754, 2
      %v766 = vrot.slane %v754, 3
      %v767 = vrot.slane %v754, 4
      %v768 = vrot.slane %v754, 5
      %v769 = vrot.slane %v754, 6
      %v770 = vrot.slane %v754, 7
      %v771 = vperm.slane %v753, 0
      %v772 = vperm.slane %v757, 0
      %v773 = vperm.slane %v758, 0
      %v774 = vperm.slane %v759, 0
      %v775 = vperm.slane %v760, 0
      %v776 = vperm.slane %v761, 0
      %v777 = vperm.slane %v762, 0
      %v778 = vperm.slane %v763, 0
      %v779 = vperm.slane %v754, 0
      %v780 = vperm.slane %v764, 0
      %v781 = vperm.slane %v765, 0
      %v782 = vperm.slane %v766, 0
      %v783 = vperm.slane %v767, 0
      %v784 = vperm.slane %v768, 0
      %v785 = vperm.slane %v769, 0
      %v786 = vperm.slane %v770, 0
      %787 = vst [vmem:[#allocation1] ss:$4 sm:$0xff] %v771
      %s788 = scalar_lea.vmem [#allocation1], 1
      %789 = vst [vmem:[%s788] ss:$4 sm:$0xff] %v772
      %s790 = scalar_lea.vmem [#allocation1], 2
      %791 = vst [vmem:[%s790] ss:$4 sm:$0xff] %v773
      %s792 = scalar_lea.vmem [#allocation1], 3
      %793 = vst [vmem:[%s792] ss:$4 sm:$0xff] %v774
      %s794 = scalar_lea.vmem [#allocation1], 32
      %795 = vst [vmem:[%s794] ss:$4 sm:$0xff] %v775
      %s796 = scalar_lea.vmem [#allocation1], 33
      %797 = vst [vmem:[%s796] ss:$4 sm:$0xff] %v776
      %s798 = scalar_lea.vmem [#allocation1], 34
      %799 = vst [vmem:[%s798] ss:$4 sm:$0xff] %v777
      %s800 = scalar_lea.vmem [#allocation1], 35
      %801 = vst [vmem:[%s800] ss:$4 sm:$0xff] %v778
      %v802 = vld.sshfl [vmem:[#allocation1] sm:$0xff pattern:$0x73625140]
      %v803 = vld.sshfl [vmem:[#allocation1 + $0x20] sm:$0xff pattern:$0x73625140]
      %804 = vst [vmem:[#allocation1] ss:$4 sm:$0xff] %v771
      %805 = vst [vmem:[%s788] ss:$4 sm:$0xff] %v772
      %806 = vst [vmem:[%s790] ss:$4 sm:$0xff] %v773
      %807 = vst [vmem:[%s792] ss:$4 sm:$0xff] %v774
      %808 = vst [vmem:[%s794] ss:$4 sm:$0xff] %v775
      %809 = vst [vmem:[%s796] ss:$4 sm:$0xff] %v776
      %810 = vst [vmem:[%s798] ss:$4 sm:$0xff] %v777
      %811 = vst [vmem:[%s800] ss:$4 sm:$0xff] %v778
      %v812 = vld.sshfl [vmem:[#allocation1] sm:$0xff pattern:$0x73625140]
      %v813 = vld.sshfl [vmem:[#allocation1 + $0x20] sm:$0xff pattern:$0x73625140]
      %814 = vst [vmem:[#allocation1] ss:$4 sm:$0xff] %v779
      %815 = vst [vmem:[%s788] ss:$4 sm:$0xff] %v780
      %816 = vst [vmem:[%s790] ss:$4 sm:$0xff] %v781
      %817 = vst [vmem:[%s792] ss:$4 sm:$0xff] %v782
      %818 = vst [vmem:[%s794] ss:$4 sm:$0xff] %v783
      %819 = vst [vmem:[%s796] ss:$4 sm:$0xff] %v784
      %820 = vst [vmem:[%s798] ss:$4 sm:$0xff] %v785
      %821 = vst [vmem:[%s800] ss:$4 sm:$0xff] %v786
      %v822 = vld.sshfl [vmem:[#allocation1] sm:$0xff pattern:$0x73625140]
      %v823 = vld.sshfl [vmem:[#allocation1 + $0x20] sm:$0xff pattern:$0x73625140]
      %824 = vst [vmem:[#allocation1] ss:$4 sm:$0xff] %v779
      %825 = vst [vmem:[%s788] ss:$4 sm:$0xff] %v780
      %826 = vst [vmem:[%s790] ss:$4 sm:$0xff] %v781
      %827 = vst [vmem:[%s792] ss:$4 sm:$0xff] %v782
      %828 = vst [vmem:[%s794] ss:$4 sm:$0xff] %v783
      %829 = vst [vmem:[%s796] ss:$4 sm:$0xff] %v784
      %830 = vst [vmem:[%s798] ss:$4 sm:$0xff] %v785
      %831 = vst [vmem:[%s800] ss:$4 sm:$0xff] %v786
      %v832 = vld.sshfl [vmem:[#allocation1] sm:$0xff pattern:$0x73625140]
      %v833 = vld.sshfl [vmem:[#allocation1 + $0x20] sm:$0xff pattern:$0x73625140]
      %834 = vrot.lane.b32.xlu0 %v802, 4
      %v835 = vpop.permute.xlu0 %834
      %836 = vrot.lane.b32.xlu0 %v803, 4
      %v837 = vpop.permute.xlu0 %836
      %838 = vrot.lane.b32.xlu0 %v812, 4
      %v839 = vpop.permute.xlu0 %838
      %840 = vrot.lane.b32.xlu0 %v813, 4
      %v841 = vpop.permute.xlu0 %840
      %842 = vrot.lane.b32.xlu0 %v822, 4
      %v843 = vpop.permute.xlu0 %842
      %844 = vrot.lane.b32.xlu0 %v823, 4
      %v845 = vpop.permute.xlu0 %844
      %846 = vrot.lane.b32.xlu0 %v832, 4
      %v847 = vpop.permute.xlu0 %846
      %848 = vrot.lane.b32.xlu0 %v833, 4
      %v849 = vpop.permute.xlu0 %848
      %vm858 = vcmask 64544
      %859 = vst.msk [vmem:[%s743 + $0x1] sm:$0xff] %vm858, %v835
      %860 = vst.msk [vmem:[%s743 + $0x9] sm:$0xff] %vm858, %v837
      %861 = vst.msk [vmem:[%s743 + $0x19] sm:$0xff] %vm858, %v839
      %862 = vst.msk [vmem:[%s743 + $0x21] sm:$0xff] %vm858, %v841
      %863 = vst.msk [vmem:[%s743 + $0x31] sm:$0xff] %vm858, %v843
      %864 = vst.msk [vmem:[%s743 + $0x39] sm:$0xff] %vm858, %v845
      %865 = vst.msk [vmem:[%s743 + $0x49] sm:$0xff] %vm858, %v847
      %866 = vst.msk [vmem:[%s743 + $0x51] sm:$0xff] %vm858, %v849
      %v867 = vld [vmem:[%s618] sm:$0xff]
      %v868 = vld [vmem:[%s618 + $0x8] sm:$0xff]
      %v869 = vmul.f32 %v867, %v725
      %v870 = vmul.f32 %v868, %v725
      %v871 = vmax.f32 %v869, 0.0
      %v872 = vmax.f32 %v870, 0.0
      %v873 = vstv %s698
      %v874 = vmul.f32 %v871, %v873
      %v875 = vmul.f32 %v872, %v873
      %876 = vst.msk [vmem:[#allocation2 + $0x1] sm:$0xff] %vm744, %v874
      %877 = vst.msk [vmem:[#allocation2 + $0x9] sm:$0xff] %vm744, %v875
      %v878 = vld [vmem:[%s661] sm:$0xff]
      %v880 = vrot.slane %v878, 1
      %v881 = vrot.slane %v878, 2
      %v882 = vrot.slane %v878, 3
      %v883 = vrot.slane %v878, 4
      %v884 = vrot.slane %v878, 5
      %v885 = vrot.slane %v878, 6
      %v886 = vrot.slane %v878, 7
      %v887 = vperm.slane %v878, 0
      %v888 = vperm.slane %v880, 0
      %v889 = vperm.slane %v881, 0
      %v890 = vperm.slane %v882, 0
      %v891 = vperm.slane %v883, 0
      %v892 = vperm.slane %v884, 0
      %v893 = vperm.slane %v885, 0
      %v894 = vperm.slane %v886, 0
      %v903 = vmul.f32 %v887, %v873
      %v904 = vmul.f32 %v888, %v873
      %v905 = vmul.f32 %v889, %v873
      %v906 = vmul.f32 %v890, %v873
      %v907 = vmul.f32 %v891, %v873
      %v908 = vmul.f32 %v892, %v873
      %v909 = vmul.f32 %v893, %v873
      %v910 = vmul.f32 %v894, %v873
      %919 = vst [vmem:[#allocation1] ss:$4 sm:$0xff] %v903
      %s920 = scalar_lea.vmem [#allocation1], 1
      %921 = vst [vmem:[%s920] ss:$4 sm:$0xff] %v904
      %s922 = scalar_lea.vmem [#allocation1], 2
      %923 = vst [vmem:[%s922] ss:$4 sm:$0xff] %v905
      %s924 = scalar_lea.vmem [#allocation1], 3
      %925 = vst [vmem:[%s924] ss:$4 sm:$0xff] %v906
      %s926 = scalar_lea.vmem [#allocation1], 32
      %927 = vst [vmem:[%s926] ss:$4 sm:$0xff] %v907
      %s928 = scalar_lea.vmem [#allocation1], 33
      %929 = vst [vmem:[%s928] ss:$4 sm:$0xff] %v908
      %s930 = scalar_lea.vmem [#allocation1], 34
      %931 = vst [vmem:[%s930] ss:$4 sm:$0xff] %v909
      %s932 = scalar_lea.vmem [#allocation1], 35
      %933 = vst [vmem:[%s932] ss:$4 sm:$0xff] %v910
      %v934 = vld.sshfl [vmem:[#allocation1] sm:$0xff pattern:$0x73625140]
      %v935 = vld.sshfl [vmem:[#allocation1 + $0x20] sm:$0xff pattern:$0x73625140]
      %936 = vrot.lane.b32.xlu0 %v934, 4
      %v937 = vpop.permute.xlu0 %936
      %938 = vrot.lane.b32.xlu0 %v935, 4
      %v939 = vpop.permute.xlu0 %938
      %942 = vst.msk [vmem:[#allocation2 + $0x1] sm:$0xff] %vm858, %v937
      %943 = vst.msk [vmem:[#allocation2 + $0x9] sm:$0xff] %vm858, %v939
      %v944 = vld [vmem:[%s635] sm:$0xff]
      %v945 = vld [vmem:[%s635 + $0x8] sm:$0xff]
      %v946 = vmul.f32 %v944, %v725
      %v947 = vmul.f32 %v945, %v725
      %v948 = vmax.f32 %v946, 0.0
      %v949 = vmax.f32 %v947, 0.0
      %v950 = vstv %s701
      %v951 = vmul.f32 %v948, %v950
      %v952 = vmul.f32 %v949, %v950
      %s953 = scalar_lea.vmem [#allocation2], 120
      %954 = vst.msk [vmem:[%s953 + $0x1] sm:$0xff] %vm744, %v951
      %955 = vst.msk [vmem:[%s953 + $0x9] sm:$0xff] %vm744, %v952
      %v956 = vld [vmem:[%s677] sm:$0xff]
      %v958 = vrot.slane %v956, 1
      %v959 = vrot.slane %v956, 2
      %v960 = vrot.slane %v956, 3
      %v961 = vrot.slane %v956, 4
      %v962 = vrot.slane %v956, 5
      %v963 = vrot.slane %v956, 6
      %v964 = vrot.slane %v956, 7
      %v965 = vperm.slane %v956, 0
      %v966 = vperm.slane %v958, 0
      %v967 = vperm.slane %v959, 0
      %v968 = vperm.slane %v960, 0
      %v969 = vperm.slane %v961, 0
      %v970 = vperm.slane %v962, 0
      %v971 = vperm.slane %v963, 0
      %v972 = vperm.slane %v964, 0
      %v981 = vmul.f32 %v965, %v950
      %v982 = vmul.f32 %v966, %v950
      %v983 = vmul.f32 %v967, %v950
      %v984 = vmul.f32 %v968, %v950
      %v985 = vmul.f32 %v969, %v950
      %v986 = vmul.f32 %v970, %v950
      %v987 = vmul.f32 %v971, %v950
      %v988 = vmul.f32 %v972, %v950
      %997 = vst [vmem:[#allocation1] ss:$4 sm:$0xff] %v981
      %s998 = scalar_lea.vmem [#allocation1], 1
      %999 = vst [vmem:[%s998] ss:$4 sm:$0xff] %v982
      %s1000 = scalar_lea.vmem [#allocation1], 2
      %1001 = vst [vmem:[%s1000] ss:$4 sm:$0xff] %v983
      %s1002 = scalar_lea.vmem [#allocation1], 3
      %1003 = vst [vmem:[%s1002] ss:$4 sm:$0xff] %v984
      %s1004 = scalar_lea.vmem [#allocation1], 32
      %1005 = vst [vmem:[%s1004] ss:$4 sm:$0xff] %v985
      %s1006 = scalar_lea.vmem [#allocation1], 33
      %1007 = vst [vmem:[%s1006] ss:$4 sm:$0xff] %v986
      %s1008 = scalar_lea.vmem [#allocation1], 34
      %1009 = vst [vmem:[%s1008] ss:$4 sm:$0xff] %v987
      %s1010 = scalar_lea.vmem [#allocation1], 35
      %1011 = vst [vmem:[%s1010] ss:$4 sm:$0xff] %v988
      %v1012 = vld.sshfl [vmem:[#allocation1] sm:$0xff pattern:$0x73625140]
      %v1013 = vld.sshfl [vmem:[#allocation1 + $0x20] sm:$0xff pattern:$0x73625140]
      %1014 = vrot.lane.b32.xlu0 %v1012, 4
      %v1015 = vpop.permute.xlu0 %1014
      %1016 = vrot.lane.b32.xlu0 %v1013, 4
      %v1017 = vpop.permute.xlu0 %1016
      %1020 = vst.msk [vmem:[%s953 + $0x1] sm:$0xff] %vm858, %v1015
      %1021 = vst.msk [vmem:[%s953 + $0x9] sm:$0xff] %vm858, %v1017
      %v1022 = vld [vmem:[#allocation2] sm:$0xff]
      %v1023 = vld [vmem:[#allocation2 + $0x8] sm:$0xff]
      %v1024 = vld [vmem:[#allocation2 + $0x10] sm:$0x3]
      %v1025 = vld [vmem:[#allocation2 + $0x18] sm:$0xff]
      %v1026 = vld [vmem:[#allocation2 + $0x20] sm:$0xff]
      %v1027 = vld [vmem:[#allocation2 + $0x28] sm:$0x3]
      %v1028 = vld [vmem:[#allocation2 + $0x30] sm:$0xff]
      %v1029 = vld [vmem:[#allocation2 + $0x38] sm:$0xff]
      %v1030 = vld [vmem:[#allocation2 + $0x40] sm:$0x3]
      %v1031 = vld [vmem:[#allocation2 + $0x48] sm:$0xff]
      %v1032 = vld [vmem:[#allocation2 + $0x50] sm:$0xff]
      %v1033 = vld [vmem:[#allocation2 + $0x58] sm:$0x3]
      %vm1046 = vcmask 1046528
      %v1047 = vrot.slane %v1022, 1
      %v1048 = vrot.slane %v1023, 1
      %v1049 = vsel %vm1046, %v1047, %v1048
      %v1050 = vrot.slane %v1024, 1
      %v1051 = vsel %vm1046, %v1048, %v1050
      %v1052 = vrot.slane %v1025, 1
      %v1053 = vrot.slane %v1026, 1
      %v1054 = vsel %vm1046, %v1052, %v1053
      %v1055 = vrot.slane %v1027, 1
      %v1056 = vsel %vm1046, %v1053, %v1055
      %v1057 = vrot.slane %v1028, 1
      %v1058 = vrot.slane %v1029, 1
      %v1059 = vsel %vm1046, %v1057, %v1058
      %v1060 = vrot.slane %v1030, 1
      %v1061 = vsel %vm1046, %v1058, %v1060
      %v1062 = vrot.slane %v1031, 1
      %v1063 = vrot.slane %v1032, 1
      %v1064 = vsel %vm1046, %v1062, %v1063
      %v1065 = vrot.slane %v1033, 1
      %v1066 = vsel %vm1046, %v1063, %v1065
      %1067 = vrot.lane.b32.xlu0 %v1049, 8
      %v1068 = vpop.permute.xlu0 %1067
      %1069 = vrot.lane.b32.xlu0 %v1051, 8
      %v1070 = vpop.permute.xlu0 %1069
      %1071 = vrot.lane.b32.xlu0 %v1054, 8
      %v1072 = vpop.permute.xlu0 %1071
      %1073 = vrot.lane.b32.xlu0 %v1056, 8
      %v1074 = vpop.permute.xlu0 %1073
      %1075 = vrot.lane.b32.xlu0 %v1059, 8
      %v1076 = vpop.permute.xlu0 %1075
      %1077 = vrot.lane.b32.xlu0 %v1061, 8
      %v1078 = vpop.permute.xlu0 %1077
      %1079 = vrot.lane.b32.xlu0 %v1064, 8
      %v1080 = vpop.permute.xlu0 %1079
      %1081 = vrot.lane.b32.xlu0 %v1066, 8
      %v1082 = vpop.permute.xlu0 %1081
      %vm1091 = vcmask 1045504
      %v1092 = vrot.slane %v1022, 2
      %v1093 = vrot.slane %v1023, 2
      %v1094 = vsel %vm1091, %v1092, %v1093
      %v1095 = vrot.slane %v1024, 2
      %v1096 = vsel %vm1091, %v1093, %v1095
      %v1097 = vrot.slane %v1025, 2
      %v1098 = vrot.slane %v1026, 2
      %v1099 = vsel %vm1091, %v1097, %v1098
      %v1100 = vrot.slane %v1027, 2
      %v1101 = vsel %vm1091, %v1098, %v1100
      %v1102 = vrot.slane %v1028, 2
      %v1103 = vrot.slane %v1029, 2
      %v1104 = vsel %vm1091, %v1102, %v1103
      %v1105 = vrot.slane %v1030, 2
      %v1106 = vsel %vm1091, %v1103, %v1105
      %v1107 = vrot.slane %v1031, 2
      %v1108 = vrot.slane %v1032, 2
      %v1109 = vsel %vm1091, %v1107, %v1108
      %v1110 = vrot.slane %v1033, 2
      %v1111 = vsel %vm1091, %v1108, %v1110
      %1112 = vrot.lane.b32.xlu0 %v1094, 16
      %v1113 = vpop.permute.xlu0 %1112
      %1114 = vrot.lane.b32.xlu0 %v1096, 16
      %v1115 = vpop.permute.xlu0 %1114
      %1116 = vrot.lane.b32.xlu0 %v1099, 16
      %v1117 = vpop.permute.xlu0 %1116
      %1118 = vrot.lane.b32.xlu0 %v1101, 16
      %v1119 = vpop.permute.xlu0 %1118
      %1120 = vrot.lane.b32.xlu0 %v1104, 16
      %v1121 = vpop.permute.xlu0 %1120
      %1122 = vrot.lane.b32.xlu0 %v1106, 16
      %v1123 = vpop.permute.xlu0 %1122
      %1124 = vrot.lane.b32.xlu0 %v1109, 16
      %v1125 = vpop.permute.xlu0 %1124
      %1126 = vrot.lane.b32.xlu0 %v1111, 16
      %v1127 = vpop.permute.xlu0 %1126
      %vm1136 = vcmask 64512
      %v1137 = vsel %vm1136, %v1022, %v1068
      %v1138 = vsel %vm1136, %v1023, %v1070
      %v1139 = vsel %vm1136, %v1025, %v1072
      %v1140 = vsel %vm1136, %v1026, %v1074
      %v1141 = vsel %vm1136, %v1028, %v1076
      %v1142 = vsel %vm1136, %v1029, %v1078
      %v1143 = vsel %vm1136, %v1031, %v1080
      %v1144 = vsel %vm1136, %v1032, %v1082
      %vm1145 = vcmask 130048
      %v1146 = vsel %vm1145, %v1137, %v1113
      %v1147 = vsel %vm1145, %v1138, %v1115
      %v1148 = vsel %vm1145, %v1139, %v1117
      %v1149 = vsel %vm1145, %v1140, %v1119
      %v1150 = vsel %vm1145, %v1141, %v1121
      %v1151 = vsel %vm1145, %v1142, %v1123
      %v1152 = vsel %vm1145, %v1143, %v1125
      %v1153 = vsel %vm1145, %v1144, %v1127
      %v1154 = vld [vmem:[%s7] sm:$0xff]
      %v1155 = vld [vmem:[%s7 + $0x8] sm:$0xff]
      %v1156 = vld [vmem:[%s7 + $0x10] sm:$0xff]
      %v1157 = vld [vmem:[%s743] sm:$0xff]
      %v1158 = vld [vmem:[%s743 + $0x8] sm:$0xff]
      %v1159 = vld [vmem:[%s743 + $0x10] sm:$0x3]
      %v1160 = vld [vmem:[%s743 + $0x18] sm:$0xff]
      %v1161 = vld [vmem:[%s743 + $0x20] sm:$0xff]
      %v1162 = vld [vmem:[%s743 + $0x28] sm:$0x3]
      %v1163 = vld [vmem:[%s743 + $0x30] sm:$0xff]
      %v1164 = vld [vmem:[%s743 + $0x38] sm:$0xff]
      %v1165 = vld [vmem:[%s743 + $0x40] sm:$0x3]
      %v1166 = vld [vmem:[%s743 + $0x48] sm:$0xff]
      %v1167 = vld [vmem:[%s743 + $0x50] sm:$0xff]
      %v1168 = vld [vmem:[%s743 + $0x58] sm:$0x3]
      %v1181 = vrot.slane %v1157, 1
      %v1182 = vrot.slane %v1158, 1
      %v1183 = vsel %vm1046, %v1181, %v1182
      %v1184 = vrot.slane %v1159, 1
      %v1185 = vsel %vm1046, %v1182, %v1184
      %v1186 = vrot.slane %v1160, 1
      %v1187 = vrot.slane %v1161, 1
      %v1188 = vsel %vm1046, %v1186, %v1187
      %v1189 = vrot.slane %v1162, 1
      %v1190 = vsel %vm1046, %v1187, %v1189
      %v1191 = vrot.slane %v1163, 1
      %v1192 = vrot.slane %v1164, 1
      %v1193 = vsel %vm1046, %v1191, %v1192
      %v1194 = vrot.slane %v1165, 1
      %v1195 = vsel %vm1046, %v1192, %v1194
      %v1196 = vrot.slane %v1166, 1
      %v1197 = vrot.slane %v1167, 1
      %v1198 = vsel %vm1046, %v1196, %v1197
      %v1199 = vrot.slane %v1168, 1
      %v1200 = vsel %vm1046, %v1197, %v1199
      %1201 = vrot.lane.b32.xlu0 %v1183, 8
      %v1202 = vpop.permute.xlu0 %1201
      %1203 = vrot.lane.b32.xlu0 %v1185, 8
      %v1204 = vpop.permute.xlu0 %1203
      %1205 = vrot.lane.b32.xlu0 %v1188, 8
      %v1206 = vpop.permute.xlu0 %1205
      %1207 = vrot.lane.b32.xlu0 %v1190, 8
      %v1208 = vpop.permute.xlu0 %1207
      %1209 = vrot.lane.b32.xlu0 %v1193, 8
      %v1210 = vpop.permute.xlu0 %1209
      %1211 = vrot.lane.b32.xlu0 %v1195, 8
      %v1212 = vpop.permute.xlu0 %1211
      %1213 = vrot.lane.b32.xlu0 %v1198, 8
      %v1214 = vpop.permute.xlu0 %1213
      %1215 = vrot.lane.b32.xlu0 %v1200, 8
      %v1216 = vpop.permute.xlu0 %1215
      %v1225 = vrot.slane %v1157, 2
      %v1226 = vrot.slane %v1158, 2
      %v1227 = vsel %vm1091, %v1225, %v1226
      %v1228 = vrot.slane %v1159, 2
      %v1229 = vsel %vm1091, %v1226, %v1228
      %v1230 = vrot.slane %v1160, 2
      %v1231 = vrot.slane %v1161, 2
      %v1232 = vsel %vm1091, %v1230, %v1231
      %v1233 = vrot.slane %v1162, 2
      %v1234 = vsel %vm1091, %v1231, %v1233
      %v1235 = vrot.slane %v1163, 2
      %v1236 = vrot.slane %v1164, 2
      %v1237 = vsel %vm1091, %v1235, %v1236
      %v1238 = vrot.slane %v1165, 2
      %v1239 = vsel %vm1091, %v1236, %v1238
      %v1240 = vrot.slane %v1166, 2
      %v1241 = vrot.slane %v1167, 2
      %v1242 = vsel %vm1091, %v1240, %v1241
      %v1243 = vrot.slane %v1168, 2
      %v1244 = vsel %vm1091, %v1241, %v1243
      %1245 = vrot.lane.b32.xlu0 %v1227, 16
      %v1246 = vpop.permute.xlu0 %1245
      %1247 = vrot.lane.b32.xlu0 %v1229, 16
      %v1248 = vpop.permute.xlu0 %1247
      %1249 = vrot.lane.b32.xlu0 %v1232, 16
      %v1250 = vpop.permute.xlu0 %1249
      %1251 = vrot.lane.b32.xlu0 %v1234, 16
      %v1252 = vpop.permute.xlu0 %1251
      %1253 = vrot.lane.b32.xlu0 %v1237, 16
      %v1254 = vpop.permute.xlu0 %1253
      %1255 = vrot.lane.b32.xlu0 %v1239, 16
      %v1256 = vpop.permute.xlu0 %1255
      %1257 = vrot.lane.b32.xlu0 %v1242, 16
      %v1258 = vpop.permute.xlu0 %1257
      %1259 = vrot.lane.b32.xlu0 %v1244, 16
      %v1260 = vpop.permute.xlu0 %1259
      %v1269 = vsel %vm1136, %v1157, %v1202
      %v1270 = vsel %vm1136, %v1158, %v1204
      %v1271 = vsel %vm1136, %v1160, %v1206
      %v1272 = vsel %vm1136, %v1161, %v1208
      %v1273 = vsel %vm1136, %v1163, %v1210
      %v1274 = vsel %vm1136, %v1164, %v1212
      %v1275 = vsel %vm1136, %v1166, %v1214
      %v1276 = vsel %vm1136, %v1167, %v1216
      %v1277 = vsel %vm1145, %v1269, %v1246
      %v1278 = vsel %vm1145, %v1270, %v1248
      %v1279 = vsel %vm1145, %v1271, %v1250
      %v1280 = vsel %vm1145, %v1272, %v1252
      %v1281 = vsel %vm1145, %v1273, %v1254
      %v1282 = vsel %vm1145, %v1274, %v1256
      %v1283 = vsel %vm1145, %v1275, %v1258
      %v1284 = vsel %vm1145, %v1276, %v1260
      %s1285 = scalar_lea.vmem %s7, 24
      %v1286 = vld [vmem:[%s1285] sm:$0xff]
      %v1287 = vld [vmem:[%s1285 + $0x8] sm:$0xff]
      %v1288 = vld [vmem:[%s1285 + $0x10] sm:$0xff]
      %vm1289 = vcmask 195584
      %v1291 = vsel %vm1289, %v1277, 0
      %v1294 = vsel %vm1289, %v1278, 0
      %v1297 = vsel %vm1289, %v1279, 0
      %v1300 = vsel %vm1289, %v1280, 0
      %v1303 = vsel %vm1289, %v1281, 0
      %v1306 = vsel %vm1289, %v1282, 0
      %v1309 = vsel %vm1289, %v1283, 0
      %v1312 = vsel %vm1289, %v1284, 0
      %1314 = vmatpush.msra.mxu0 0.0
      %1315 = vmatpush.msra.mxu0 0.0
      %1316 = vmatpush.msra.mxu0 0.0
      %1317 = vmatpush.msra.mxu0 0.0
      %1318 = vmatpush.msra.mxu0 0.0
      %1319 = vmatpush.msra.mxu0 0.0
      %1320 = vmatpush.msra.mxu0 0.0
      %1321 = vmatpush.msra.mxu0 0.0
      %1322 = vmatpush.msra.mxu0 0.0
      %1323 = vmatpush.msra.mxu0 0.0
      %1324 = vmatpush.msra.mxu0 0.0
      %1325 = vmatpush.msra.mxu0 0.0
      %1326 = vmatpush.msra.mxu0 0.0
      %1327 = vmatpush.msra.mxu0 %v1288
      %1328 = vmatpush.msra.mxu0 %v1287
      %1329 = vmatpush.msra.mxu0 %v1286
      %1330 = vmatmul.f32.gmra.mxu0 %v1291
      %v1331 = vpop.f32.mrf.mxu0
      %v1332 = vadd.f32 0.0, %v1331
      %1333 = vmatmul.f32.gmra.mxu0 %v1294
      %v1334 = vpop.f32.mrf.mxu0
      %v1335 = vadd.f32 0.0, %v1334
      %1336 = vmatmul.f32.gmra.mxu0 %v1297
      %v1337 = vpop.f32.mrf.mxu0
      %v1338 = vadd.f32 0.0, %v1337
      %1339 = vmatmul.f32.gmra.mxu0 %v1300
      %v1340 = vpop.f32.mrf.mxu0
      %v1341 = vadd.f32 0.0, %v1340
      %1342 = vmatmul.f32.gmra.mxu0 %v1303
      %v1343 = vpop.f32.mrf.mxu0
      %v1344 = vadd.f32 0.0, %v1343
      %1345 = vmatmul.f32.gmra.mxu0 %v1306
      %v1346 = vpop.f32.mrf.mxu0
      %v1347 = vadd.f32 0.0, %v1346
      %1348 = vmatmul.f32.gmra.mxu0 %v1309
      %v1349 = vpop.f32.mrf.mxu0
      %v1350 = vadd.f32 0.0, %v1349
      %1351 = vmatmul.f32.gmra.mxu0 %v1312
      %v1352 = vpop.f32.mrf.mxu0
      %v1353 = vadd.f32 0.0, %v1352
      %1354 = vdwg.mxu0
      %v1356 = vsel %vm1289, %v1146, 0
      %v1359 = vsel %vm1289, %v1147, 0
      %v1362 = vsel %vm1289, %v1148, 0
      %v1365 = vsel %vm1289, %v1149, 0
      %v1368 = vsel %vm1289, %v1150, 0
      %v1371 = vsel %vm1289, %v1151, 0
      %v1374 = vsel %vm1289, %v1152, 0
      %v1377 = vsel %vm1289, %v1153, 0
      %1379 = vmatpush.msra.mxu0 0.0
      %1380 = vmatpush.msra.mxu0 0.0
      %1381 = vmatpush.msra.mxu0 0.0
      %1382 = vmatpush.msra.mxu0 0.0
      %1383 = vmatpush.msra.mxu0 0.0
      %1384 = vmatpush.msra.mxu0 0.0
      %1385 = vmatpush.msra.mxu0 0.0
      %1386 = vmatpush.msra.mxu0 0.0
      %1387 = vmatpush.msra.mxu0 0.0
      %1388 = vmatpush.msra.mxu0 0.0
      %1389 = vmatpush.msra.mxu0 0.0
      %1390 = vmatpush.msra.mxu0 0.0
      %1391 = vmatpush.msra.mxu0 0.0
      %1392 = vmatpush.msra.mxu0 %v1156
      %1393 = vmatpush.msra.mxu0 %v1155
      %1394 = vmatpush.msra.mxu0 %v1154
      %1395 = vmatmul.f32.gmra.mxu0 %v1356
      %v1396 = vpop.f32.mrf.mxu0
      %v1397 = vadd.f32 %v1332, %v1396
      %1398 = vmatmul.f32.gmra.mxu0 %v1359
      %v1399 = vpop.f32.mrf.mxu0
      %v1400 = vadd.f32 %v1335, %v1399
      %1401 = vmatmul.f32.gmra.mxu0 %v1362
      %v1402 = vpop.f32.mrf.mxu0
      %v1403 = vadd.f32 %v1338, %v1402
      %1404 = vmatmul.f32.gmra.mxu0 %v1365
      %v1405 = vpop.f32.mrf.mxu0
      %v1406 = vadd.f32 %v1341, %v1405
      %1407 = vmatmul.f32.gmra.mxu0 %v1368
      %v1408 = vpop.f32.mrf.mxu0
      %v1409 = vadd.f32 %v1344, %v1408
      %1410 = vmatmul.f32.gmra.mxu0 %v1371
      %v1411 = vpop.f32.mrf.mxu0
      %v1412 = vadd.f32 %v1347, %v1411
      %1413 = vmatmul.f32.gmra.mxu0 %v1374
      %v1414 = vpop.f32.mrf.mxu0
      %v1415 = vadd.f32 %v1350, %v1414
      %1416 = vmatmul.f32.gmra.mxu0 %v1377
      %v1417 = vpop.f32.mrf.mxu0
      %v1418 = vadd.f32 %v1353, %v1417
      %1419 = vdwg.mxu0
      %s1420 = scalar_lea.vmem [#allocation2], 48
      %v1421 = vld [vmem:[%s1420] sm:$0xff]
      %v1422 = vld [vmem:[%s1420 + $0x8] sm:$0xff]
      %v1423 = vld [vmem:[%s1420 + $0x10] sm:$0x3]
      %v1424 = vld [vmem:[%s1420 + $0x18] sm:$0xff]
      %v1425 = vld [vmem:[%s1420 + $0x20] sm:$0xff]
      %v1426 = vld [vmem:[%s1420 + $0x28] sm:$0x3]
      %v1427 = vld [vmem:[%s1420 + $0x30] sm:$0xff]
      %v1428 = vld [vmem:[%s1420 + $0x38] sm:$0xff]
      %v1429 = vld [vmem:[%s1420 + $0x40] sm:$0x3]
      %v1430 = vld [vmem:[%s1420 + $0x48] sm:$0xff]
      %v1431 = vld [vmem:[%s1420 + $0x50] sm:$0xff]
      %v1432 = vld [vmem:[%s1420 + $0x58] sm:$0x3]
      %v1445 = vrot.slane %v1421, 1
      %v1446 = vrot.slane %v1422, 1
      %v1447 = vsel %vm1046, %v1445, %v1446
      %v1448 = vrot.slane %v1423, 1
      %v1449 = vsel %vm1046, %v1446, %v1448
      %v1450 = vrot.slane %v1424, 1
      %v1451 = vrot.slane %v1425, 1
      %v1452 = vsel %vm1046, %v1450, %v1451
      %v1453 = vrot.slane %v1426, 1
      %v1454 = vsel %vm1046, %v1451, %v1453
      %v1455 = vrot.slane %v1427, 1
      %v1456 = vrot.slane %v1428, 1
      %v1457 = vsel %vm1046, %v1455, %v1456
      %v1458 = vrot.slane %v1429, 1
      %v1459 = vsel %vm1046, %v1456, %v1458
      %v1460 = vrot.slane %v1430, 1
      %v1461 = vrot.slane %v1431, 1
      %v1462 = vsel %vm1046, %v1460, %v1461
      %v1463 = vrot.slane %v1432, 1
      %v1464 = vsel %vm1046, %v1461, %v1463
      %1465 = vrot.lane.b32.xlu0 %v1447, 8
      %v1466 = vpop.permute.xlu0 %1465
      %1467 = vrot.lane.b32.xlu0 %v1449, 8
      %v1468 = vpop.permute.xlu0 %1467
      %1469 = vrot.lane.b32.xlu0 %v1452, 8
      %v1470 = vpop.permute.xlu0 %1469
      %1471 = vrot.lane.b32.xlu0 %v1454, 8
      %v1472 = vpop.permute.xlu0 %1471
      %1473 = vrot.lane.b32.xlu0 %v1457, 8
      %v1474 = vpop.permute.xlu0 %1473
      %1475 = vrot.lane.b32.xlu0 %v1459, 8
      %v1476 = vpop.permute.xlu0 %1475
      %1477 = vrot.lane.b32.xlu0 %v1462, 8
      %v1478 = vpop.permute.xlu0 %1477
      %1479 = vrot.lane.b32.xlu0 %v1464, 8
      %v1480 = vpop.permute.xlu0 %1479
      %v1489 = vrot.slane %v1421, 2
      %v1490 = vrot.slane %v1422, 2
      %v1491 = vsel %vm1091, %v1489, %v1490
      %v1492 = vrot.slane %v1423, 2
      %v1493 = vsel %vm1091, %v1490, %v1492
      %v1494 = vrot.slane %v1424, 2
      %v1495 = vrot.slane %v1425, 2
      %v1496 = vsel %vm1091, %v1494, %v1495
      %v1497 = vrot.slane %v1426, 2
      %v1498 = vsel %vm1091, %v1495, %v1497
      %v1499 = vrot.slane %v1427, 2
      %v1500 = vrot.slane %v1428, 2
      %v1501 = vsel %vm1091, %v1499, %v1500
      %v1502 = vrot.slane %v1429, 2
      %v1503 = vsel %vm1091, %v1500, %v1502
      %v1504 = vrot.slane %v1430, 2
      %v1505 = vrot.slane %v1431, 2
      %v1506 = vsel %vm1091, %v1504, %v1505
      %v1507 = vrot.slane %v1432, 2
      %v1508 = vsel %vm1091, %v1505, %v1507
      %1509 = vrot.lane.b32.xlu0 %v1491, 16
      %v1510 = vpop.permute.xlu0 %1509
      %1511 = vrot.lane.b32.xlu0 %v1493, 16
      %v1512 = vpop.permute.xlu0 %1511
      %1513 = vrot.lane.b32.xlu0 %v1496, 16
      %v1514 = vpop.permute.xlu0 %1513
      %1515 = vrot.lane.b32.xlu0 %v1498, 16
      %v1516 = vpop.permute.xlu0 %1515
      %1517 = vrot.lane.b32.xlu0 %v1501, 16
      %v1518 = vpop.permute.xlu0 %1517
      %1519 = vrot.lane.b32.xlu0 %v1503, 16
      %v1520 = vpop.permute.xlu0 %1519
      %1521 = vrot.lane.b32.xlu0 %v1506, 16
      %v1522 = vpop.permute.xlu0 %1521
      %1523 = vrot.lane.b32.xlu0 %v1508, 16
      %v1524 = vpop.permute.xlu0 %1523
      %v1533 = vsel %vm1136, %v1421, %v1466
      %v1534 = vsel %vm1136, %v1422, %v1468
      %v1535 = vsel %vm1136, %v1424, %v1470
      %v1536 = vsel %vm1136, %v1425, %v1472
      %v1537 = vsel %vm1136, %v1427, %v1474
      %v1538 = vsel %vm1136, %v1428, %v1476
      %v1539 = vsel %vm1136, %v1430, %v1478
      %v1540 = vsel %vm1136, %v1431, %v1480
      %v1541 = vsel %vm1145, %v1533, %v1510
      %v1542 = vsel %vm1145, %v1534, %v1512
      %v1543 = vsel %vm1145, %v1535, %v1514
      %v1544 = vsel %vm1145, %v1536, %v1516
      %v1545 = vsel %vm1145, %v1537, %v1518
      %v1546 = vsel %vm1145, %v1538, %v1520
      %v1547 = vsel %vm1145, %v1539, %v1522
      %v1548 = vsel %vm1145, %v1540, %v1524
      %s1549 = scalar_lea.vmem %s7, 48
      %v1550 = vld [vmem:[%s1549] sm:$0xff]
      %v1551 = vld [vmem:[%s1549 + $0x8] sm:$0xff]
      %v1552 = vld [vmem:[%s1549 + $0x10] sm:$0xff]
      %v1554 = vsel %vm1289, %v1541, 0
      %v1557 = vsel %vm1289, %v1542, 0
      %v1560 = vsel %vm1289, %v1543, 0
      %v1563 = vsel %vm1289, %v1544, 0
      %v1566 = vsel %vm1289, %v1545, 0
      %v1569 = vsel %vm1289, %v1546, 0
      %v1572 = vsel %vm1289, %v1547, 0
      %v1575 = vsel %vm1289, %v1548, 0
      %1577 = vmatpush.msra.mxu0 0.0
      %1578 = vmatpush.msra.mxu0 0.0
      %1579 = vmatpush.msra.mxu0 0.0
      %1580 = vmatpush.msra.mxu0 0.0
      %1581 = vmatpush.msra.mxu0 0.0
      %1582 = vmatpush.msra.mxu0 0.0
      %1583 = vmatpush.msra.mxu0 0.0
      %1584 = vmatpush.msra.mxu0 0.0
      %1585 = vmatpush.msra.mxu0 0.0
      %1586 = vmatpush.msra.mxu0 0.0
      %1587 = vmatpush.msra.mxu0 0.0
      %1588 = vmatpush.msra.mxu0 0.0
      %1589 = vmatpush.msra.mxu0 0.0
      %1590 = vmatpush.msra.mxu0 %v1552
      %1591 = vmatpush.msra.mxu0 %v1551
      %1592 = vmatpush.msra.mxu0 %v1550
      %1593 = vmatmul.f32.gmra.mxu0 %v1554
      %v1594 = vpop.f32.mrf.mxu0
      %v1595 = vadd.f32 0.0, %v1594
      %1596 = vmatmul.f32.gmra.mxu0 %v1557
      %v1597 = vpop.f32.mrf.mxu0
      %v1598 = vadd.f32 0.0, %v1597
      %1599 = vmatmul.f32.gmra.mxu0 %v1560
      %v1600 = vpop.f32.mrf.mxu0
      %v1601 = vadd.f32 0.0, %v1600
      %1602 = vmatmul.f32.gmra.mxu0 %v1563
      %v1603 = vpop.f32.mrf.mxu0
      %v1604 = vadd.f32 0.0, %v1603
      %1605 = vmatmul.f32.gmra.mxu0 %v1566
      %v1606 = vpop.f32.mrf.mxu0
      %v1607 = vadd.f32 0.0, %v1606
      %1608 = vmatmul.f32.gmra.mxu0 %v1569
      %v1609 = vpop.f32.mrf.mxu0
      %v1610 = vadd.f32 0.0, %v1609
      %1611 = vmatmul.f32.gmra.mxu0 %v1572
      %v1612 = vpop.f32.mrf.mxu0
      %v1613 = vadd.f32 0.0, %v1612
      %1614 = vmatmul.f32.gmra.mxu0 %v1575
      %v1615 = vpop.f32.mrf.mxu0
      %v1616 = vadd.f32 0.0, %v1615
      %1617 = vdwg.mxu0
      %v1618 = vadd.f32 %v1397, %v1595
      %v1619 = vadd.f32 %v1400, %v1598
      %v1620 = vadd.f32 %v1403, %v1601
      %v1621 = vadd.f32 %v1406, %v1604
      %v1622 = vadd.f32 %v1409, %v1607
      %v1623 = vadd.f32 %v1412, %v1610
      %v1624 = vadd.f32 %v1415, %v1613
      %v1625 = vadd.f32 %v1418, %v1616
      %v1626 = vld [vmem:[%s8] sm:$0x1]
      %v1628 = vperm.slane %v1626, 0
      %v1630 = vmul.f32 %v1618, %v1628
      %v1631 = vmul.f32 %v1619, %v1628
      %v1632 = vmul.f32 %v1620, %v1628
      %v1633 = vmul.f32 %v1621, %v1628
      %v1634 = vmul.f32 %v1622, %v1628
      %v1635 = vmul.f32 %v1623, %v1628
      %v1636 = vmul.f32 %v1624, %v1628
      %v1637 = vmul.f32 %v1625, %v1628
      %v1638 = vld [vmem:[%s9] sm:$0x1]
      %v1640 = vperm.slane %v1638, 0
      %v1642 = vadd.f32 %v1630, %v1640
      %v1643 = vadd.f32 %v1631, %v1640
      %v1644 = vadd.f32 %v1632, %v1640
      %v1645 = vadd.f32 %v1633, %v1640
      %v1646 = vadd.f32 %v1634, %v1640
      %v1647 = vadd.f32 %v1635, %v1640
      %v1648 = vadd.f32 %v1636, %v1640
      %v1649 = vadd.f32 %v1637, %v1640
      %v1650 = vmax.f32 %v1642, 0.0
      %v1651 = vmax.f32 %v1643, 0.0
      %v1652 = vmax.f32 %v1644, 0.0
      %v1653 = vmax.f32 %v1645, 0.0
      %v1654 = vmax.f32 %v1646, 0.0
      %v1655 = vmax.f32 %v1647, 0.0
      %v1656 = vmax.f32 %v1648, 0.0
      %v1657 = vmax.f32 %v1649, 0.0
      %1658 = vst.msk [vmem:[%s694] sm:$0xff] %vm744, %v1650
      %1659 = vst.msk [vmem:[%s694 + $0x8] sm:$0xff] %vm744, %v1651
      %1660 = vst.msk [vmem:[%s694 + $0x10] sm:$0xff] %vm744, %v1652
      %1661 = vst.msk [vmem:[%s694 + $0x18] sm:$0xff] %vm744, %v1653
      %1662 = vst.msk [vmem:[%s694 + $0x20] sm:$0xff] %vm744, %v1654
      %1663 = vst.msk [vmem:[%s694 + $0x28] sm:$0xff] %vm744, %v1655
      %1664 = vst.msk [vmem:[%s694 + $0x30] sm:$0xff] %vm744, %v1656
      %1665 = vst.msk [vmem:[%s694 + $0x38] sm:$0xff] %vm744, %v1657
      %s1666 = smul.u32 4, %s26
      %p1667 = scmp.lt.s32.totalorder %s25, 1
      %s1668 = scalar_select %p1667, %s25, 1
      %p1669 = scmp.lt.s32.totalorder %s1666, 15
      %s1670 = scalar_select %p1669, %s1666, 15
      %s1671 = smul.addr %s1670, 2
      %s1672 = smul.addr %s1668, 32
      %s1673 = sadd.s32 %s1671, %s1672
      %s1674 = smul.addr %s1673, 8
      %s1675 = scalar_lea.vmem %s10, %s1674
      // Predicated region
      $region61: #{tpu_custom_call.1} parent=59 // pred_check
        %p1676 = pneg %p342
      $region62: #{tpu_custom_call.1} parent=59 // pred_check_branch
        %1678 = sbr.rel (%p1676) target = $region64
      $region63: #{tpu_custom_call.1} parent=59 // pred_region
        %s1679 = smul.u32 4, %s26
      $region64: #{tpu_custom_call.1} parent=59 // pred_fallthru
        _
    $region60: #{tpu_custom_call.1} parent=5 // pred_fallthru
      _
    %p1680 = scmp.le.s32.totalorder 2, %s16
    // Predicated region
    $region65: #{tpu_custom_call.1} parent=5 // pred_check
      %p1681 = pneg %p1680
    $region66: #{tpu_custom_call.1} parent=5 // pred_check_branch
      %1683 = sbr.rel (%p1681) target = $region68
    $region67: #{tpu_custom_call.1} parent=5 // pred_region
      %s1684 = ssub.s32 %s16, 2
      // Predicated region
      $region69: #{tpu_custom_call.1} parent=67 // pred_check
        %p1685 = pneg %p348
      $region70: #{tpu_custom_call.1} parent=67 // pred_check_branch
        %1687 = sbr.rel (%p1685) target = $region72
      $region71: #{tpu_custom_call.1} parent=67 // pred_region
        %s1688 = smul.u32 4, %s28
        %p1689 = scmp.lt.s32.totalorder %s27, 1
        %s1690 = scalar_select %p1689, %s27, 1
        %p1691 = scmp.lt.s32.totalorder %s1688, 15
        %s1692 = scalar_select %p1691, %s1688, 15
        %s1693 = smul.addr %s1692, 2
        %s1694 = smul.addr %s1690, 32
        %s1695 = sadd.s32 %s1693, %s1694
        %s1696 = smul.addr %s1695, 8
        %s1697 = scalar_lea.vmem %s10, %s1696
      $region72: #{tpu_custom_call.1} parent=67 // pred_fallthru
        _
    $region68: #{tpu_custom_call.1} parent=5 // pred_fallthru
      _
  $region6: #{tpu_custom_call.1} parent=0 // loop_footer
    %s20 = sadd.s32 1, %s16
  $region7: #{tpu_custom_call.1} parent=0 // loop_footer_branch
    %15 = sbr.rel target = $region3
  $region8: #{tpu_custom_call.1} parent=0 // loop_exit
    _

</llo_original>
